<compile_context>
chip_gen: v7x
topology: tpu7x:2x2x1
jax: 0.10.0
libtpu: 0.0.40
codegen_flags: <defaults>
</compile_context>

<pallas_src>
import math
import functools

import jax
import jax.numpy as jnp
from jax import lax
from jax.experimental import pallas as pl
from jax.experimental.pallas import tpu as pltpu


def _round_up(x, m):
    return ((x + m - 1) // m) * m


def mig_kernel(x_ref, wg_ref, bg_ref, wm_ref, bm_ref, out_ref, *,
               d_model, dc, num_inputs, eps, chunked):
    """One row tile (rows = batch*length flattened):
       LayerNorm (gamma/beta pre-folded into the weights) ->
       gates = sigmoid(xhat @ Wg + bg), mid = xhat @ Wm + bm ->
       sum over the num_inputs dc-wide chunks of gates*mid -> + residual."""
    x = x_ref[...].astype(jnp.float32)                     # (TR, T)

    # LayerNorm statistics (biased variance, eps under rsqrt).  gamma/beta are
    # folded into Wg/Wm/bg/bm in the wrapper, so xhat goes straight to the MXU.
    mean = jnp.mean(x, axis=-1, keepdims=True)
    xc = x - mean
    var = jnp.mean(xc * xc, axis=-1, keepdims=True)
    xhat = xc * lax.rsqrt(var + eps)                       # EUP rsqrt
    xhat_bf = xhat.astype(jnp.bfloat16)                    # bf16 MXU operands

    tr = x.shape[0]

    def gate_times_mid(wg, bg, wm, bm):
        g = jnp.dot(xhat_bf, wg, preferred_element_type=jnp.float32) + bg
        m = jnp.dot(xhat_bf, wm, preferred_element_type=jnp.float32) + bm
        # sigmoid = 1/(1+exp(-g)): exp + approx reciprocal both on the EUP slot.
        g = pl.reciprocal(1.0 + jnp.exp(-g), approx=True)
        return g * m

    if chunked:
        # Per-chunk loop keeps live temporaries at ~(TR, dc) instead of (TR, NG).
        acc = jnp.zeros((tr, dc), jnp.float32)
        for j in range(num_inputs):
            sl = pl.ds(j * dc, dc)
            acc = acc + gate_times_mid(wg_ref[:, sl], bg_ref[:, sl],
                                       wm_ref[:, sl], bm_ref[:, sl])
    else:
        # Tiny d_model: one wide matmul pair, then sum the dc-wide chunks
        # (dc is a multiple of 128, so every slice is lane-aligned).
        prod = gate_times_mid(wg_ref[...], bg_ref[...], wm_ref[...], bm_ref[...])
        acc = prod[:, 0:dc]
        for j in range(1, num_inputs):
            acc = acc + prod[:, j * dc:(j + 1) * dc]

    # Residual = inputs[0], i.e. the first d_model columns of the x slab
    # (no separate residual input / duplicate HBM->VMEM DMA).
    # TODO(synk): nn.Dropout(p=0.1) inside `gates` and on the output is identity
    #             in eval mode; training would need PRNG-based masks.
    res = x[:, 0:d_model]
    if dc == d_model:
        out_ref[...] = (acc + res).astype(out_ref.dtype)
    else:
        # Lane-dense bulk store of the padded block, then add the residual to
        # the first d_model columns (only those are read back by the wrapper;
        # the padded columns of acc are exactly zero).
        out_ref[...] = acc.astype(out_ref.dtype)
        out_ref[:, 0:d_model] = (acc[:, 0:d_model] + res).astype(out_ref.dtype)


def _fold_layernorm_affine(gamma, beta, w, b):
    """Fold LN's affine into a following Linear:
       (xhat*gamma + beta) @ W + b == xhat @ (gamma[:,None]*W) + (beta @ W + b)."""
    gamma = gamma.reshape(-1, 1).astype(jnp.float32)
    beta = beta.reshape(1, -1).astype(jnp.float32)
    w = w.astype(jnp.float32)
    b = b.reshape(1, -1).astype(jnp.float32)
    return gamma * w, beta @ w + b


def _pad_chunks(w, b, num_inputs, d_model, dc):
    """Zero-pad each d_model-wide output chunk up to dc (multiple of 128)."""
    if dc == d_model:
        return w, b
    t = w.shape[0]
    w = jnp.pad(w.reshape(t, num_inputs, d_model),
                ((0, 0), (0, 0), (0, dc - d_model))).reshape(t, num_inputs * dc)
    b = jnp.pad(b.reshape(1, num_inputs, d_model),
                ((0, 0), (0, 0), (0, dc - d_model))).reshape(1, num_inputs * dc)
    return w, b


def _row_tiling(rows):
    # >=128-row tiles (MXU fill, amortize ~0.35us/grid step); prefer 256; keep
    # >=2 grid steps so the "parallel" axis can shard across v7x's two TCs.
    tr = 256 if rows >= 512 else 128
    n_tiles = max(2, -(-rows // tr))
    return tr, n_tiles * tr


def multi_input_gates(inputs, params, *, d_model, eps=1e-5):
    """Mirrors MultiInputGates.forward (eval mode).

    inputs: list of [B, L, *] arrays; inputs[0] has last dim d_model.
    params: (gamma, beta, wg, bg, wm, bm); nn.Linear weights pre-transposed to
            (in_features, out_features), biases shaped (out,) or (1, out)."""
    gamma, beta, wg, bg, wm, bm = params
    num_inputs = len(inputs)
    B, L, _ = inputs[0].shape
    rows = B * L
    T = sum(int(a.shape[-1]) for a in inputs)
    out_dtype = inputs[0].dtype

    # Lane-padded chunk width (always a multiple of 128).
    dc = d_model if d_model % 128 == 0 else _round_up(d_model, 128)
    NGp = num_inputs * dc

    # Fold LN affine into both Linears (one-time wrapper cost), pad the output
    # chunks, and ship the weight matrices to the MXU as bf16.
    wg_f, bg_f = _fold_layernorm_affine(gamma, beta, wg, bg)
    wm_f, bm_f = _fold_layernorm_affine(gamma, beta, wm, bm)
    wg_f, bg_f = _pad_chunks(wg_f, bg_f, num_inputs, d_model, dc)
    wm_f, bm_f = _pad_chunks(wm_f, bm_f, num_inputs, d_model, dc)
    wg_bf = wg_f.astype(jnp.bfloat16)
    wm_bf = wm_f.astype(jnp.bfloat16)

    # Wrapper-side layout plumbing: concat + flatten to a lane-dense row slab.
    # TODO(synk): for very large rows the concat is an extra HBM pass; a
    # concat-free variant would pass the N inputs separately and split Wg/Wm
    # along K (with partial LN stats) inside the kernel.
    x = jnp.concatenate([a.astype(jnp.float32) for a in inputs],
                        axis=-1).reshape(rows, T)
    TR, rows_pad = _row_tiling(rows)
    if rows_pad != rows:
        x = jnp.pad(x, ((0, rows_pad - rows), (0, 0)))

    chunked = (d_model >= 128) and (num_inputs > 1)
    kernel = functools.partial(mig_kernel, d_model=d_model, dc=dc,
                               num_inputs=num_inputs, eps=eps, chunked=chunked)

    # Rough VMEM budget: double-buffered x/out tiles, single-buffered bf16
    # weights, ~3 NG-wide f32 temporaries, plus margin; capped at v7x's 64 MiB.
    est = (2 * TR * T * 4 + 2 * TR * dc * 4 + 2 * T * NGp * 2
           + 2 * NGp * 4 + 3 * TR * NGp * 4 + (8 << 20))
    vmem_limit = int(min(max(est, 32 << 20), 64 << 20))

    def call(single_buffer_weights):
        def const_spec(shape):
            if single_buffer_weights:
                # Constant index_map => block never changes; one buffer suffices.
                return pl.BlockSpec(shape, lambda i: (0, 0),
                                    pipeline_mode=pl.Buffered(1))
            return pl.BlockSpec(shape, lambda i: (0, 0))

        return pl.pallas_call(
            kernel,
            out_shape=jax.ShapeDtypeStruct((rows_pad, dc), out_dtype),
            grid_spec=pltpu.PrefetchScalarGridSpec(
                num_scalar_prefetch=0,
                grid=(rows_pad // TR,),
                in_specs=[
                    pl.BlockSpec((TR, T), lambda i: (i, 0)),  # concatenated inputs
                    const_spec((T, NGp)),                     # W_gates   (bf16)
                    const_spec((1, NGp)),                     # b_gates   (f32, folded)
                    const_spec((T, NGp)),                     # W_linears (bf16)
                    const_spec((1, NGp)),                     # b_linears (f32, folded)
                ],
                out_specs=pl.BlockSpec((TR, dc), lambda i: (i, 0)),
            ),
            compiler_params=pltpu.CompilerParams(
                dimension_semantics=("parallel",),
                vmem_limit_bytes=vmem_limit),
        )(x, wg_bf, bg_f, wm_bf, bm_f)

    try:
        out = call(single_buffer_weights=True)
    except Exception:
        # Fallback if pipeline_mode=pl.Buffered(1) is unsupported in this jax.
        out = call(single_buffer_weights=False)

    return out[:rows, :d_model].reshape(B, L, d_model)


def reference_mig(inputs, params, *, d_model, eps=1e-5):
    """Pure-JAX f32 replica of the PyTorch forward (eval mode)."""
    gamma, beta, wg, bg, wm, bm = params
    num_inputs = len(inputs)
    B, L, _ = inputs[0].shape
    x = jnp.concatenate(inputs, axis=-1)
    mean = jnp.mean(x, axis=-1, keepdims=True)
    var = jnp.mean((x - mean) ** 2, axis=-1, keepdims=True)
    inp = (x - mean) / jnp.sqrt(var + eps) * gamma.reshape(1, -1) + beta.reshape(1, -1)
    gates = jax.nn.sigmoid(inp @ wg + bg.reshape(1, -1))
    mid = inp @ wm + bm.reshape(1, -1)
    out_cat = gates * mid
    out = out_cat.reshape(B, L, num_inputs, d_model).sum(axis=-2)
    return out + inputs[0]


if __name__ == "__main__":
    def make_case(key, B, L, d_model, input_sizes):
        num_inputs = 1 + len(input_sizes)
        total = d_model + sum(input_sizes)
        NG = d_model * num_inputs
        ks = jax.random.split(key, 6 + num_inputs)
        lim = 1.0 / math.sqrt(total)
        gamma = 1.0 + 0.1 * jax.random.normal(ks[0], (1, total), jnp.float32)
        beta = 0.1 * jax.random.normal(ks[1], (1, total), jnp.float32)
        wg = jax.random.uniform(ks[2], (total, NG), jnp.float32, -lim, lim)
        bg = jax.random.uniform(ks[3], (1, NG), jnp.float32, -lim, lim)
        wm = jax.random.uniform(ks[4], (total, NG), jnp.float32, -lim, lim)
        bm = jax.random.uniform(ks[5], (1, NG), jnp.float32, -lim, lim)
        params = (gamma, beta, wg, bg, wm, bm)
        sizes = [d_model] + list(input_sizes)
        inputs = [jax.random.normal(ks[6 + i], (B, L, s), jnp.float32)
                  for i, s in enumerate(sizes)]
        return inputs, params

    root = jax.random.PRNGKey(0)
    k1, k2 = jax.random.split(root)

    # Case 1: tiny d_model=32, extra inputs [16, 16] -> exercises the
    # wide-matmul path with 128-lane chunk padding.
    inputs1, params1 = make_case(k1, 2, 8, 32, [16, 16])
    out1 = multi_input_gates(inputs1, params1, d_model=32)
    jax.block_until_ready(out1)
    ref1 = reference_mig(inputs1, params1, d_model=32)
    assert out1.shape == ref1.shape
    # bf16 MXU operands + approx reciprocal => relaxed tolerance vs f32 reference.
    assert jnp.allclose(out1, ref1, atol=5e-2, rtol=5e-2), (
        float(jnp.max(jnp.abs(out1 - ref1))))

    # Case 2: d_model=128, extra input [64] -> exercises the per-chunk path
    # (no padding, everything lane-aligned).
    inputs2, params2 = make_case(k2, 2, 8, 128, [64])
    out2 = multi_input_gates(inputs2, params2, d_model=128)
    jax.block_until_ready(out2)
    ref2 = reference_mig(inputs2, params2, d_model=128)
    assert out2.shape == ref2.shape
    assert jnp.allclose(out2, ref2, atol=5e-2, rtol=5e-2), (
        float(jnp.max(jnp.abs(out2 - ref2))))

    print("KERNEL_OK")
</pallas_src>

<mosaic_0001>
module attributes {stable_mosaic.version = 11 : i64} {
  func.func @mig_kernel(%arg0: i32, %arg1: memref<128x64xf32, #tpu.memory_space<vmem>>, %arg2: memref<64x384xbf16, #tpu.memory_space<vmem>>, %arg3: memref<1x384xf32, #tpu.memory_space<vmem>>, %arg4: memref<64x384xbf16, #tpu.memory_space<vmem>>, %arg5: memref<1x384xf32, #tpu.memory_space<vmem>>, %arg6: memref<128x128xf32, #tpu.memory_space<vmem>>) attributes {dimension_semantics = [#tpu.dimension_semantics<parallel>], iteration_bounds = array<i64: 2>, scalar_prefetch = 0 : i64, scratch_operands = 0 : i64, tpu.core_type = #tpu.core_type<tc>, window_params = [{transform_indices = @transform_0, window_bounds = array<i64: 128, 64>}, {pipeline_mode = #tpu.pipeline_mode<synchronous>, transform_indices = @transform_1, window_bounds = array<i64: 64, 384>}, {pipeline_mode = #tpu.pipeline_mode<synchronous>, transform_indices = @transform_2, window_bounds = array<i64: 1, 384>}, {pipeline_mode = #tpu.pipeline_mode<synchronous>, transform_indices = @transform_3, window_bounds = array<i64: 64, 384>}, {pipeline_mode = #tpu.pipeline_mode<synchronous>, transform_indices = @transform_4, window_bounds = array<i64: 1, 384>}, {transform_indices = @transform_5, window_bounds = array<i64: 128, 128>}]} {
    %c0 = arith.constant 0 : index
    %c0_0 = arith.constant 0 : index
    %0 = vector.load %arg1[%c0, %c0_0] : memref<128x64xf32, #tpu.memory_space<vmem>>, vector<128x64xf32>
    %cst = arith.constant dense<0.000000e+00> : vector<128xf32>
    %1 = vector.multi_reduction <add>, %0, %cst [1] : vector<128x64xf32> to vector<128xf32>
    %2 = vector.shape_cast %1 : vector<128xf32> to vector<128x1xf32>
    %cst_1 = arith.constant 6.400000e+01 : f32
    %3 = vector.broadcast %cst_1 : f32 to vector<128x1xf32>
    %4 = arith.divf %2, %3 : vector<128x1xf32>
    %5 = vector.broadcast %4 : vector<128x1xf32> to vector<128x64xf32>
    %6 = arith.subf %0, %5 : vector<128x64xf32>
    %7 = arith.mulf %6, %6 : vector<128x64xf32>
    %cst_2 = arith.constant dense<0.000000e+00> : vector<128xf32>
    %8 = vector.multi_reduction <add>, %7, %cst_2 [1] : vector<128x64xf32> to vector<128xf32>
    %9 = vector.shape_cast %8 : vector<128xf32> to vector<128x1xf32>
    %cst_3 = arith.constant 6.400000e+01 : f32
    %10 = vector.broadcast %cst_3 : f32 to vector<128x1xf32>
    %11 = arith.divf %9, %10 : vector<128x1xf32>
    %cst_4 = arith.constant 9.99999974E-6 : f32
    %12 = vector.broadcast %cst_4 : f32 to vector<128x1xf32>
    %13 = arith.addf %11, %12 : vector<128x1xf32>
    %14 = math.rsqrt %13 : vector<128x1xf32>
    %15 = vector.broadcast %14 : vector<128x1xf32> to vector<128x64xf32>
    %16 = arith.mulf %6, %15 : vector<128x64xf32>
    %17 = arith.truncf %16 : vector<128x64xf32> to vector<128x64xbf16>
    %c0_5 = arith.constant 0 : index
    %c0_6 = arith.constant 0 : index
    %18 = vector.load %arg2[%c0_5, %c0_6] : memref<64x384xbf16, #tpu.memory_space<vmem>>, vector<64x384xbf16>
    %c0_7 = arith.constant 0 : index
    %c0_8 = arith.constant 0 : index
    %19 = vector.load %arg3[%c0_7, %c0_8] : memref<1x384xf32, #tpu.memory_space<vmem>>, vector<1x384xf32>
    %c0_9 = arith.constant 0 : index
    %c0_10 = arith.constant 0 : index
    %20 = vector.load %arg4[%c0_9, %c0_10] : memref<64x384xbf16, #tpu.memory_space<vmem>>, vector<64x384xbf16>
    %c0_11 = arith.constant 0 : index
    %c0_12 = arith.constant 0 : index
    %21 = vector.load %arg5[%c0_11, %c0_12] : memref<1x384xf32, #tpu.memory_space<vmem>>, vector<1x384xf32>
    %cst_13 = arith.constant dense<0.000000e+00> : vector<128x384xf32>
    %22 = tpu.matmul %17, %18, %cst_13 {dimension_numbers = #tpu.dot_dimension_numbers<[1], [0], [0], [1], [0, 0, 1, 1], [], []>} : vector<128x64xbf16>, vector<64x384xbf16>, vector<128x384xf32> -> vector<128x384xf32>
    %23 = vector.broadcast %19 : vector<1x384xf32> to vector<128x384xf32>
    %24 = arith.addf %22, %23 : vector<128x384xf32>
    %cst_14 = arith.constant dense<0.000000e+00> : vector<128x384xf32>
    %25 = tpu.matmul %17, %20, %cst_14 {dimension_numbers = #tpu.dot_dimension_numbers<[1], [0], [0], [1], [0, 0, 1, 1], [], []>} : vector<128x64xbf16>, vector<64x384xbf16>, vector<128x384xf32> -> vector<128x384xf32>
    %26 = vector.broadcast %21 : vector<1x384xf32> to vector<128x384xf32>
    %27 = arith.addf %25, %26 : vector<128x384xf32>
    %cst_15 = arith.constant 0.000000e+00 : f32
    %28 = vector.broadcast %cst_15 : f32 to vector<128x384xf32>
    %29 = arith.subf %28, %24 : vector<128x384xf32>
    %30 = math.exp %29 : vector<128x384xf32>
    %cst_16 = arith.constant 1.000000e+00 : f32
    %31 = vector.broadcast %cst_16 : f32 to vector<128x384xf32>
    %32 = arith.addf %31, %30 : vector<128x384xf32>
    %33 = tpu.reciprocal %32 {approx = true} : vector<128x384xf32> -> vector<128x384xf32>
    %34 = arith.mulf %33, %27 : vector<128x384xf32>
    %35 = vector.extract_strided_slice %34 {offsets = [0, 0], sizes = [128, 128], strides = [1, 1]} : vector<128x384xf32> to vector<128x128xf32>
    %36 = vector.extract_strided_slice %34 {offsets = [0, 128], sizes = [128, 128], strides = [1, 1]} : vector<128x384xf32> to vector<128x128xf32>
    %37 = arith.addf %35, %36 : vector<128x128xf32>
    %38 = vector.extract_strided_slice %34 {offsets = [0, 256], sizes = [128, 128], strides = [1, 1]} : vector<128x384xf32> to vector<128x128xf32>
    %39 = arith.addf %37, %38 : vector<128x128xf32>
    %40 = vector.extract_strided_slice %0 {offsets = [0, 0], sizes = [128, 32], strides = [1, 1]} : vector<128x64xf32> to vector<128x32xf32>
    %c0_17 = arith.constant 0 : index
    %c0_18 = arith.constant 0 : index
    %41 = vector.load %arg6[%c0_17, %c0_18] : memref<128x128xf32, #tpu.memory_space<vmem>>, vector<128x128xf32>
    tpu.vector_store %arg6[%c0_17, %c0_18], %39 {strides = array<i32>} : memref<128x128xf32, #tpu.memory_space<vmem>>, vector<128x128xf32>,
    %42 = vector.extract_strided_slice %39 {offsets = [0, 0], sizes = [128, 32], strides = [1, 1]} : vector<128x128xf32> to vector<128x32xf32>
    %43 = arith.addf %42, %40 : vector<128x32xf32>
    %c0_19 = arith.constant 0 : index
    %c0_20 = arith.constant 0 : index
    %44 = vector.load %arg6[%c0_19, %c0_20] : memref<128x128xf32, #tpu.memory_space<vmem>>, vector<128x32xf32>
    tpu.vector_store %arg6[%c0_19, %c0_20], %43 {strides = array<i32>} : memref<128x128xf32, #tpu.memory_space<vmem>>, vector<128x32xf32>,
    return
  }
  func.func @transform_0(%arg0: i32) -> (i32, i32) {
    %c0_i32 = arith.constant 0 : i32
    %c0_i32_0 = arith.constant 0 : i32
    return %arg0, %c0_i32 : i32, i32
  }
  func.func @transform_1(%arg0: i32) -> (i32, i32) {
    %c0_i32 = arith.constant 0 : i32
    %c0_i32_0 = arith.constant 0 : i32
    %c0_i32_1 = arith.constant 0 : i32
    return %c0_i32, %c0_i32_0 : i32, i32
  }
  func.func @transform_2(%arg0: i32) -> (i32, i32) {
    %c0_i32 = arith.constant 0 : i32
    %c0_i32_0 = arith.constant 0 : i32
    %c0_i32_1 = arith.constant 0 : i32
    return %c0_i32, %c0_i32_0 : i32, i32
  }
  func.func @transform_3(%arg0: i32) -> (i32, i32) {
    %c0_i32 = arith.constant 0 : i32
    %c0_i32_0 = arith.constant 0 : i32
    %c0_i32_1 = arith.constant 0 : i32
    return %c0_i32, %c0_i32_0 : i32, i32
  }
  func.func @transform_4(%arg0: i32) -> (i32, i32) {
    %c0_i32 = arith.constant 0 : i32
    %c0_i32_0 = arith.constant 0 : i32
    %c0_i32_1 = arith.constant 0 : i32
    return %c0_i32, %c0_i32_0 : i32, i32
  }
  func.func @transform_5(%arg0: i32) -> (i32, i32) {
    %c0_i32 = arith.constant 0 : i32
    %c0_i32_0 = arith.constant 0 : i32
    return %arg0, %c0_i32 : i32, i32
  }
}

module attributes {stable_mosaic.version = 11 : i64} {
  func.func @mig_kernel(%arg0: i32, %arg1: memref<128x64xf32, #tpu.memory_space<vmem>>, %arg2: memref<64x384xbf16, #tpu.memory_space<vmem>>, %arg3: memref<1x384xf32, #tpu.memory_space<vmem>>, %arg4: memref<64x384xbf16, #tpu.memory_space<vmem>>, %arg5: memref<1x384xf32, #tpu.memory_space<vmem>>, %arg6: memref<128x128xf32, #tpu.memory_space<vmem>>) attributes {dimension_semantics = [#tpu.dimension_semantics<parallel>], iteration_bounds = array<i64: 2>, scalar_prefetch = 0 : i64, scratch_operands = 0 : i64, tpu.core_type = #tpu.core_type<tc>, window_params = [{transform_indices = @transform_0, window_bounds = array<i64: 128, 64>}, {pipeline_mode = #tpu.pipeline_mode<synchronous>, transform_indices = @transform_1, window_bounds = array<i64: 64, 384>}, {pipeline_mode = #tpu.pipeline_mode<synchronous>, transform_indices = @transform_2, window_bounds = array<i64: 1, 384>}, {pipeline_mode = #tpu.pipeline_mode<synchronous>, transform_indices = @transform_3, window_bounds = array<i64: 64, 384>}, {pipeline_mode = #tpu.pipeline_mode<synchronous>, transform_indices = @transform_4, window_bounds = array<i64: 1, 384>}, {transform_indices = @transform_5, window_bounds = array<i64: 128, 128>}]} {
    %c0 = arith.constant 0 : index
    %c0_0 = arith.constant 0 : index
    %0 = vector.load %arg1[%c0, %c0_0] : memref<128x64xf32, #tpu.memory_space<vmem>>, vector<128x64xf32>
    %cst = arith.constant dense<0.000000e+00> : vector<128xf32>
    %1 = vector.multi_reduction <add>, %0, %cst [1] : vector<128x64xf32> to vector<128xf32>
    %2 = vector.shape_cast %1 : vector<128xf32> to vector<128x1xf32>
    %cst_1 = arith.constant 6.400000e+01 : f32
    %3 = vector.broadcast %cst_1 : f32 to vector<128x1xf32>
    %4 = arith.divf %2, %3 : vector<128x1xf32>
    %5 = vector.broadcast %4 : vector<128x1xf32> to vector<128x64xf32>
    %6 = arith.subf %0, %5 : vector<128x64xf32>
    %7 = arith.mulf %6, %6 : vector<128x64xf32>
    %cst_2 = arith.constant dense<0.000000e+00> : vector<128xf32>
    %8 = vector.multi_reduction <add>, %7, %cst_2 [1] : vector<128x64xf32> to vector<128xf32>
    %9 = vector.shape_cast %8 : vector<128xf32> to vector<128x1xf32>
    %cst_3 = arith.constant 6.400000e+01 : f32
    %10 = vector.broadcast %cst_3 : f32 to vector<128x1xf32>
    %11 = arith.divf %9, %10 : vector<128x1xf32>
    %cst_4 = arith.constant 9.99999974E-6 : f32
    %12 = vector.broadcast %cst_4 : f32 to vector<128x1xf32>
    %13 = arith.addf %11, %12 : vector<128x1xf32>
    %14 = math.rsqrt %13 : vector<128x1xf32>
    %15 = vector.broadcast %14 : vector<128x1xf32> to vector<128x64xf32>
    %16 = arith.mulf %6, %15 : vector<128x64xf32>
    %17 = arith.truncf %16 : vector<128x64xf32> to vector<128x64xbf16>
    %c0_5 = arith.constant 0 : index
    %c0_6 = arith.constant 0 : index
    %18 = vector.load %arg2[%c0_5, %c0_6] : memref<64x384xbf16, #tpu.memory_space<vmem>>, vector<64x384xbf16>
    %c0_7 = arith.constant 0 : index
    %c0_8 = arith.constant 0 : index
    %19 = vector.load %arg3[%c0_7, %c0_8] : memref<1x384xf32, #tpu.memory_space<vmem>>, vector<1x384xf32>
    %c0_9 = arith.constant 0 : index
    %c0_10 = arith.constant 0 : index
    %20 = vector.load %arg4[%c0_9, %c0_10] : memref<64x384xbf16, #tpu.memory_space<vmem>>, vector<64x384xbf16>
    %c0_11 = arith.constant 0 : index
    %c0_12 = arith.constant 0 : index
    %21 = vector.load %arg5[%c0_11, %c0_12] : memref<1x384xf32, #tpu.memory_space<vmem>>, vector<1x384xf32>
    %cst_13 = arith.constant dense<0.000000e+00> : vector<128x384xf32>
    %22 = tpu.matmul %17, %18, %cst_13 {dimension_numbers = #tpu.dot_dimension_numbers<[1], [0], [0], [1], [0, 0, 1, 1], [], []>} : vector<128x64xbf16>, vector<64x384xbf16>, vector<128x384xf32> -> vector<128x384xf32>
    %23 = vector.broadcast %19 : vector<1x384xf32> to vector<128x384xf32>
    %24 = arith.addf %22, %23 : vector<128x384xf32>
    %cst_14 = arith.constant dense<0.000000e+00> : vector<128x384xf32>
    %25 = tpu.matmul %17, %20, %cst_14 {dimension_numbers = #tpu.dot_dimension_numbers<[1], [0], [0], [1], [0, 0, 1, 1], [], []>} : vector<128x64xbf16>, vector<64x384xbf16>, vector<128x384xf32> -> vector<128x384xf32>
    %26 = vector.broadcast %21 : vector<1x384xf32> to vector<128x384xf32>
    %27 = arith.addf %25, %26 : vector<128x384xf32>
    %cst_15 = arith.constant 0.000000e+00 : f32
    %28 = vector.broadcast %cst_15 : f32 to vector<128x384xf32>
    %29 = arith.subf %28, %24 : vector<128x384xf32>
    %30 = math.exp %29 : vector<128x384xf32>
    %cst_16 = arith.constant 1.000000e+00 : f32
    %31 = vector.broadcast %cst_16 : f32 to vector<128x384xf32>
    %32 = arith.addf %31, %30 : vector<128x384xf32>
    %33 = tpu.reciprocal %32 {approx = true} : vector<128x384xf32> -> vector<128x384xf32>
    %34 = arith.mulf %33, %27 : vector<128x384xf32>
    %35 = vector.extract_strided_slice %34 {offsets = [0, 0], sizes = [128, 128], strides = [1, 1]} : vector<128x384xf32> to vector<128x128xf32>
    %36 = vector.extract_strided_slice %34 {offsets = [0, 128], sizes = [128, 128], strides = [1, 1]} : vector<128x384xf32> to vector<128x128xf32>
    %37 = arith.addf %35, %36 : vector<128x128xf32>
    %38 = vector.extract_strided_slice %34 {offsets = [0, 256], sizes = [128, 128], strides = [1, 1]} : vector<128x384xf32> to vector<128x128xf32>
    %39 = arith.addf %37, %38 : vector<128x128xf32>
    %40 = vector.extract_strided_slice %0 {offsets = [0, 0], sizes = [128, 32], strides = [1, 1]} : vector<128x64xf32> to vector<128x32xf32>
    %c0_17 = arith.constant 0 : index
    %c0_18 = arith.constant 0 : index
    %41 = vector.load %arg6[%c0_17, %c0_18] : memref<128x128xf32, #tpu.memory_space<vmem>>, vector<128x128xf32>
    tpu.vector_store %arg6[%c0_17, %c0_18], %39 {strides = array<i32>} : memref<128x128xf32, #tpu.memory_space<vmem>>, vector<128x128xf32>,
    %42 = vector.extract_strided_slice %39 {offsets = [0, 0], sizes = [128, 32], strides = [1, 1]} : vector<128x128xf32> to vector<128x32xf32>
    %43 = arith.addf %42, %40 : vector<128x32xf32>
    %c0_19 = arith.constant 0 : index
    %c0_20 = arith.constant 0 : index
    %44 = vector.load %arg6[%c0_19, %c0_20] : memref<128x128xf32, #tpu.memory_space<vmem>>, vector<128x32xf32>
    tpu.vector_store %arg6[%c0_19, %c0_20], %43 {strides = array<i32>} : memref<128x128xf32, #tpu.memory_space<vmem>>, vector<128x32xf32>,
    return
  }
  func.func @transform_0(%arg0: i32) -> (i32, i32) {
    %c0_i32 = arith.constant 0 : i32
    %c0_i32_0 = arith.constant 0 : i32
    return %arg0, %c0_i32 : i32, i32
  }
  func.func @transform_1(%arg0: i32) -> (i32, i32) {
    %c0_i32 = arith.constant 0 : i32
    %c0_i32_0 = arith.constant 0 : i32
    %c0_i32_1 = arith.constant 0 : i32
    return %c0_i32, %c0_i32_0 : i32, i32
  }
  func.func @transform_2(%arg0: i32) -> (i32, i32) {
    %c0_i32 = arith.constant 0 : i32
    %c0_i32_0 = arith.constant 0 : i32
    %c0_i32_1 = arith.constant 0 : i32
    return %c0_i32, %c0_i32_0 : i32, i32
  }
  func.func @transform_3(%arg0: i32) -> (i32, i32) {
    %c0_i32 = arith.constant 0 : i32
    %c0_i32_0 = arith.constant 0 : i32
    %c0_i32_1 = arith.constant 0 : i32
    return %c0_i32, %c0_i32_0 : i32, i32
  }
  func.func @transform_4(%arg0: i32) -> (i32, i32) {
    %c0_i32 = arith.constant 0 : i32
    %c0_i32_0 = arith.constant 0 : i32
    %c0_i32_1 = arith.constant 0 : i32
    return %c0_i32, %c0_i32_0 : i32, i32
  }
  func.func @transform_5(%arg0: i32) -> (i32, i32) {
    %c0_i32 = arith.constant 0 : i32
    %c0_i32_0 = arith.constant 0 : i32
    return %arg0, %c0_i32 : i32, i32
  }
}

</mosaic_0001>

<llo_original>
// kernel: tpu_custom_call.1
$region0: #{tpu_custom_call.1}
  #allocation0 [shape = 'u32[]', space=smem, size = 0x4, offset = 0x4, fixed_abs, tag = 'smem constant byte address 0x4 - core index']
  #allocation1 [shape = 'u32[144,128]{1,0:T(1,128)}', space=vmem, size = 0x12000, scoped, tag = 'internal scratch']
  %s0 = inlined_call_operand.vmem [shape: f32[256,64], index: 0, kind: input, shape index: {}]
  %s1 = inlined_call_operand.vmem [shape: bf16[64,384], index: 1, kind: input, shape index: {}]
  %s2 = inlined_call_operand.vmem [shape: f32[1,384], index: 2, kind: input, shape index: {}]
  %s3 = inlined_call_operand.vmem [shape: bf16[64,384], index: 3, kind: input, shape index: {}]
  %s4 = inlined_call_operand.vmem [shape: f32[1,384], index: 4, kind: input, shape index: {}]
  %s5 = inlined_call_operand.hbm [shape: f32[256,128], index: 5, kind: output, shape index: {}]
  %s6 = sld [smem:[#allocation0]]
  $region53: #{tpu_custom_call.1} parent=0
    _
  %s8 = ssub.s32 1, %s6
  %s9 = scalar_select 0, %s8, %s6
  $region1: #{tpu_custom_call.1} parent=0
    #allocation2 [shape = 'u8[131072]{0}', space=vmem, size = 0x20000, scoped, tag = 'output window, operand 0']
    #allocation3 [shape = 's32[2]{0}', space=sflag, size = 0x8, scoped, tag = 'scoped memory for tpu_custom_call.1']
    %10 = vsyncpa [#allocation3], 0
    %s11 = scalar_lea.sflag [#allocation3], 1
    %12 = vsyncpa %s11, 0
    loop: start=0, step=1, limit=4
    $region2: #{tpu_custom_call.1} parent=1 // loop_pre_header
      _
    $region3: #{tpu_custom_call.1} parent=1 // loop_header
      %s14 = sphi 0, %s18
      %p15 = scmp.ge.s32.totalorder %s14, 4
      %s24 = sphi 0, %s26
      %s27 = sphi 0, %s24
      %s28 = sphi 0, %s27
      %s44 = sphi 0, %s28
      %s48 = sphi 0, %s48
      %s50 = sphi 0, %s48
      %s51 = sphi 0, %s50
      %s65 = sphi 0, %s51
      %s69 = sphi 0, %s69
      %s71 = sphi 0, %s69
      %s72 = sphi 0, %s71
      %s86 = sphi 0, %s72
      %s90 = sphi 0, %s90
      %s92 = sphi 0, %s90
      %s93 = sphi 0, %s92
      %s107 = sphi 0, %s93
      %s111 = sphi 0, %s111
      %s113 = sphi 0, %s111
      %s114 = sphi 0, %s113
      %s128 = sphi 0, %s114
      %s134 = sphi 0, %s136
      %s137 = sphi 0, %s134
      %s138 = sphi 0, %s137
      %s154 = sphi 0, %s138
    $region4: #{tpu_custom_call.1} parent=1 // loop_header_branch
      %17 = sbr.rel (%p15) target = $region8
    $region5: #{tpu_custom_call.1} parent=1 // loop_body
      %s19 = ssub.s32 %s14, 1
      %s20 = ssub.s32 %s14, 2
      %s21 = sadd.s32 %s14, 1
      %s22 = ssub.s32 %s14, %s21
      %p23 = scmp.eq.s32.totalorder %s22, 0
      %s25 = sadd.s32 %s24, 1
      %s26 = scalar_select %p23, %s24, %s25
      %p29 = pneg %p23
      %p30 = scmp.eq.s32.totalorder %s14, 1
      %p31 = por %p29, %p30
      %p32 = scmp.ne.s32.totalorder %s24, %s27
      %p33 = scmp.eq.s32.totalorder %s14, 0
      %p34 = por %p32, %p33
      %p35 = scmp.ne.s32.totalorder %s24, %s27
      %p36 = scmp.eq.s32.totalorder %s19, 1
      %p37 = por %p35, %p36
      %p38 = scmp.ne.s32.totalorder %s27, %s28
      %p39 = scmp.eq.s32.totalorder %s19, 0
      %p40 = por %p38, %p39
      %p41 = scmp.ne.s32.totalorder %s27, %s28
      %p42 = scmp.eq.s32.totalorder %s20, 1
      %p43 = por %p41, %p42
      %p45 = scmp.ne.s32.totalorder %s28, %s44
      %p46 = scmp.eq.s32.totalorder %s20, 0
      %p47 = por %p45, %p46
      %s49 = sadd.s32 %s48, 1
      %p52 = scmp.eq.s32.totalorder %s14, 1
      %p53 = scmp.ne.s32.totalorder %s48, %s50
      %p54 = scmp.eq.s32.totalorder %s14, 0
      %p55 = por %p53, %p54
      %p56 = scmp.ne.s32.totalorder %s48, %s50
      %p57 = scmp.eq.s32.totalorder %s19, 1
      %p58 = por %p56, %p57
      %p59 = scmp.ne.s32.totalorder %s50, %s51
      %p60 = scmp.eq.s32.totalorder %s19, 0
      %p61 = por %p59, %p60
      %p62 = scmp.ne.s32.totalorder %s50, %s51
      %p63 = scmp.eq.s32.totalorder %s20, 1
      %p64 = por %p62, %p63
      %p66 = scmp.ne.s32.totalorder %s51, %s65
      %p67 = scmp.eq.s32.totalorder %s20, 0
      %p68 = por %p66, %p67
      %s70 = sadd.s32 %s69, 1
      %p73 = scmp.eq.s32.totalorder %s14, 1
      %p74 = scmp.ne.s32.totalorder %s69, %s71
      %p75 = scmp.eq.s32.totalorder %s14, 0
      %p76 = por %p74, %p75
      %p77 = scmp.ne.s32.totalorder %s69, %s71
      %p78 = scmp.eq.s32.totalorder %s19, 1
      %p79 = por %p77, %p78
      %p80 = scmp.ne.s32.totalorder %s71, %s72
      %p81 = scmp.eq.s32.totalorder %s19, 0
      %p82 = por %p80, %p81
      %p83 = scmp.ne.s32.totalorder %s71, %s72
      %p84 = scmp.eq.s32.totalorder %s20, 1
      %p85 = por %p83, %p84
      %p87 = scmp.ne.s32.totalorder %s72, %s86
      %p88 = scmp.eq.s32.totalorder %s20, 0
      %p89 = por %p87, %p88
      %s91 = sadd.s32 %s90, 1
      %p94 = scmp.eq.s32.totalorder %s14, 1
      %p95 = scmp.ne.s32.totalorder %s90, %s92
      %p96 = scmp.eq.s32.totalorder %s14, 0
      %p97 = por %p95, %p96
      %p98 = scmp.ne.s32.totalorder %s90, %s92
      %p99 = scmp.eq.s32.totalorder %s19, 1
      %p100 = por %p98, %p99
      %p101 = scmp.ne.s32.totalorder %s92, %s93
      %p102 = scmp.eq.s32.totalorder %s19, 0
      %p103 = por %p101, %p102
      %p104 = scmp.ne.s32.totalorder %s92, %s93
      %p105 = scmp.eq.s32.totalorder %s20, 1
      %p106 = por %p104, %p105
      %p108 = scmp.ne.s32.totalorder %s93, %s107
      %p109 = scmp.eq.s32.totalorder %s20, 0
      %p110 = por %p108, %p109
      %s112 = sadd.s32 %s111, 1
      %p115 = scmp.eq.s32.totalorder %s14, 1
      %p116 = scmp.ne.s32.totalorder %s111, %s113
      %p117 = scmp.eq.s32.totalorder %s14, 0
      %p118 = por %p116, %p117
      %p119 = scmp.ne.s32.totalorder %s111, %s113
      %p120 = scmp.eq.s32.totalorder %s19, 1
      %p121 = por %p119, %p120
      %p122 = scmp.ne.s32.totalorder %s113, %s114
      %p123 = scmp.eq.s32.totalorder %s19, 0
      %p124 = por %p122, %p123
      %p125 = scmp.ne.s32.totalorder %s113, %s114
      %p126 = scmp.eq.s32.totalorder %s20, 1
      %p127 = por %p125, %p126
      %p129 = scmp.ne.s32.totalorder %s114, %s128
      %p130 = scmp.eq.s32.totalorder %s20, 0
      %p131 = por %p129, %p130
      %s132 = ssub.s32 %s14, %s21
      %p133 = scmp.eq.s32.totalorder %s132, 0
      %s135 = sadd.s32 %s134, 1
      %s136 = scalar_select %p133, %s134, %s135
      %p139 = pneg %p133
      %p140 = scmp.eq.s32.totalorder %s14, 1
      %p141 = por %p139, %p140
      %p142 = scmp.ne.s32.totalorder %s134, %s137
      %p143 = scmp.eq.s32.totalorder %s14, 0
      %p144 = por %p142, %p143
      %p145 = scmp.ne.s32.totalorder %s134, %s137
      %p146 = scmp.eq.s32.totalorder %s19, 1
      %p147 = por %p145, %p146
      %p148 = scmp.ne.s32.totalorder %s137, %s138
      %p149 = scmp.eq.s32.totalorder %s19, 0
      %p150 = por %p148, %p149
      %p151 = scmp.ne.s32.totalorder %s137, %s138
      %p152 = scmp.eq.s32.totalorder %s20, 1
      %p153 = por %p151, %p152
      %p155 = scmp.ne.s32.totalorder %s138, %s154
      %p156 = scmp.eq.s32.totalorder %s20, 0
      %p157 = por %p155, %p156
      %p158 = scmp.le.s32.totalorder 1, %s14
      %p159 = scmp.lt.s32.totalorder %s14, 3
      %p160 = pnand %p158, %p159
      %p161 = pneg %p160
      // Predicated region
      $region9: #{tpu_custom_call.1} parent=5 // pred_check
        _
      $region10: #{tpu_custom_call.1} parent=5 // pred_check_branch
        %163 = sbr.rel (%p160) target = $region12
      $region11: #{tpu_custom_call.1} parent=5 // pred_region
        %s164 = ssub.s32 %s14, 1
        // Predicated region
        $region13: #{tpu_custom_call.1} parent=11 // pred_check
          %p165 = pneg %p61
        $region14: #{tpu_custom_call.1} parent=11 // pred_check_branch
          %167 = sbr.rel (%p165) target = $region16
        $region15: #{tpu_custom_call.1} parent=11 // pred_region
          _
        $region16: #{tpu_custom_call.1} parent=11 // pred_fallthru
          _
        // Predicated region
        $region17: #{tpu_custom_call.1} parent=11 // pred_check
          %p168 = pneg %p82
        $region18: #{tpu_custom_call.1} parent=11 // pred_check_branch
          %170 = sbr.rel (%p168) target = $region20
        $region19: #{tpu_custom_call.1} parent=11 // pred_region
          _
        $region20: #{tpu_custom_call.1} parent=11 // pred_fallthru
          _
        // Predicated region
        $region21: #{tpu_custom_call.1} parent=11 // pred_check
          %p171 = pneg %p103
        $region22: #{tpu_custom_call.1} parent=11 // pred_check_branch
          %173 = sbr.rel (%p171) target = $region24
        $region23: #{tpu_custom_call.1} parent=11 // pred_region
          _
        $region24: #{tpu_custom_call.1} parent=11 // pred_fallthru
          _
        // Predicated region
        $region25: #{tpu_custom_call.1} parent=11 // pred_check
          %p174 = pneg %p124
        $region26: #{tpu_custom_call.1} parent=11 // pred_check_branch
          %176 = sbr.rel (%p174) target = $region28
        $region27: #{tpu_custom_call.1} parent=11 // pred_region
          _
        $region28: #{tpu_custom_call.1} parent=11 // pred_fallthru
          _
      $region12: #{tpu_custom_call.1} parent=5 // pred_fallthru
        _
      %p177 = scmp.lt.s32.totalorder %s14, 2
      // Predicated region
      $region29: #{tpu_custom_call.1} parent=5 // pred_check
        %p178 = pneg %p177
      $region30: #{tpu_custom_call.1} parent=5 // pred_check_branch
        %180 = sbr.rel (%p178) target = $region32
      $region31: #{tpu_custom_call.1} parent=5 // pred_region
        // Predicated region
        $region33: #{tpu_custom_call.1} parent=31 // pred_check
          %p181 = pneg %p34
        $region34: #{tpu_custom_call.1} parent=31 // pred_check_branch
          %183 = sbr.rel (%p181) target = $region36
        $region35: #{tpu_custom_call.1} parent=31 // pred_region
          %s184 = smul.u32 16, %s14
          %p185 = scmp.lt.s32.totalorder %s184, 31
          %s186 = scalar_select %p185, %s184, 31
          %s187 = smul.addr %s186, 8
          %s188 = scalar_lea.vmem %s0, %s187
          %s189 = smul.u32 16, %s14
        $region36: #{tpu_custom_call.1} parent=31 // pred_fallthru
          _
      $region32: #{tpu_custom_call.1} parent=5 // pred_fallthru
        _
      %p190 = scmp.le.s32.totalorder 1, %s14
      %p191 = scmp.lt.s32.totalorder %s14, 3
      %p192 = pnand %p190, %p191
      %p193 = pneg %p192
      // Predicated region
      $region37: #{tpu_custom_call.1} parent=5 // pred_check
        _
      $region38: #{tpu_custom_call.1} parent=5 // pred_check_branch
        %195 = sbr.rel (%p192) target = $region40
      $region39: #{tpu_custom_call.1} parent=5 // pred_region
        %s196 = ssub.s32 %s14, 1
        %s197 = smul.u32 16, %s19
        %p198 = scmp.lt.s32.totalorder %s197, 31
        %s199 = scalar_select %p198, %s197, 31
        %s200 = smul.addr %s199, 8
        %s201 = scalar_lea.vmem %s0, %s200
        %p202 = pneg %p40
        %p203 = pneg %p37
        %p204 = pneg %p61
        %p205 = pneg %p58
        %p206 = pneg %p82
        %p207 = pneg %p79
        %p208 = pneg %p103
        %p209 = pneg %p100
        %p210 = pneg %p124
        %p211 = pneg %p121
        %p212 = pneg %p150
        %p213 = pneg %p147
        %s214 = sand.u32 %s137, 1
        %s215 = scalar_lea.sflag [#allocation3], %s214
        %s216 = sand.u32 %s137, 1
        %s217 = smul.addr %s216, 128
        %s218 = scalar_lea.vmem [#allocation2], %s217
        %s219 = smul.u32 16, %s19
        %p220 = scmp.lt.s32.totalorder %s219, 31
        %s221 = scalar_select %p220, %s219, 31
        %s222 = smul.addr %s221, 8
        %s223 = scalar_lea.vmem %s0, %s222
        %s224 = smul.u32 16, %s19
        %s225 = smul.u32 16, %s19
        %v227 = vld [vmem:[%s223] sm:$0xff]
        %v228 = vld [vmem:[%s223 + $0x8] sm:$0xff]
        %v229 = vld [vmem:[%s223 + $0x10] sm:$0xff]
        %v230 = vld [vmem:[%s223 + $0x18] sm:$0xff]
        %v231 = vld [vmem:[%s223 + $0x20] sm:$0xff]
        %v232 = vld [vmem:[%s223 + $0x28] sm:$0xff]
        %v233 = vld [vmem:[%s223 + $0x30] sm:$0xff]
        %v234 = vld [vmem:[%s223 + $0x38] sm:$0xff]
        %v235 = vld [vmem:[%s223 + $0x40] sm:$0xff]
        %v236 = vld [vmem:[%s223 + $0x48] sm:$0xff]
        %v237 = vld [vmem:[%s223 + $0x50] sm:$0xff]
        %v238 = vld [vmem:[%s223 + $0x58] sm:$0xff]
        %v239 = vld [vmem:[%s223 + $0x60] sm:$0xff]
        %v240 = vld [vmem:[%s223 + $0x68] sm:$0xff]
        %v241 = vld [vmem:[%s223 + $0x70] sm:$0xff]
        %v242 = vld [vmem:[%s223 + $0x78] sm:$0xff]
        %vm243 = vcmask 523264
        %v244 = vsel %vm243, %v227, 0.0
        %245 = vadd.xlane.f32.xlu0 %v244
        %v246 = vpop.xlane.xlu0 %245
        %v247 = vsel %vm243, %v228, 0.0
        %248 = vadd.xlane.f32.xlu0 %v247
        %v249 = vpop.xlane.xlu0 %248
        %v250 = vsel %vm243, %v229, 0.0
        %251 = vadd.xlane.f32.xlu0 %v250
        %v252 = vpop.xlane.xlu0 %251
        %v253 = vsel %vm243, %v230, 0.0
        %254 = vadd.xlane.f32.xlu0 %v253
        %v255 = vpop.xlane.xlu0 %254
        %v256 = vsel %vm243, %v231, 0.0
        %257 = vadd.xlane.f32.xlu0 %v256
        %v258 = vpop.xlane.xlu0 %257
        %v259 = vsel %vm243, %v232, 0.0
        %260 = vadd.xlane.f32.xlu0 %v259
        %v261 = vpop.xlane.xlu0 %260
        %v262 = vsel %vm243, %v233, 0.0
        %263 = vadd.xlane.f32.xlu0 %v262
        %v264 = vpop.xlane.xlu0 %263
        %v265 = vsel %vm243, %v234, 0.0
        %266 = vadd.xlane.f32.xlu0 %v265
        %v267 = vpop.xlane.xlu0 %266
        %v268 = vsel %vm243, %v235, 0.0
        %269 = vadd.xlane.f32.xlu0 %v268
        %v270 = vpop.xlane.xlu0 %269
        %v271 = vsel %vm243, %v236, 0.0
        %272 = vadd.xlane.f32.xlu0 %v271
        %v273 = vpop.xlane.xlu0 %272
        %v274 = vsel %vm243, %v237, 0.0
        %275 = vadd.xlane.f32.xlu0 %v274
        %v276 = vpop.xlane.xlu0 %275
        %v277 = vsel %vm243, %v238, 0.0
        %278 = vadd.xlane.f32.xlu0 %v277
        %v279 = vpop.xlane.xlu0 %278
        %v280 = vsel %vm243, %v239, 0.0
        %281 = vadd.xlane.f32.xlu0 %v280
        %v282 = vpop.xlane.xlu0 %281
        %v283 = vsel %vm243, %v240, 0.0
        %284 = vadd.xlane.f32.xlu0 %v283
        %v285 = vpop.xlane.xlu0 %284
        %v286 = vsel %vm243, %v241, 0.0
        %287 = vadd.xlane.f32.xlu0 %v286
        %v288 = vpop.xlane.xlu0 %287
        %v289 = vsel %vm243, %v242, 0.0
        %290 = vadd.xlane.f32.xlu0 %v289
        %v291 = vpop.xlane.xlu0 %290
        %v292 = vrcp.pop 64.0
        %v293 = vmul.f32 %v246, %v292
        %v294 = vmul.f32 %v249, %v292
        %v295 = vmul.f32 %v252, %v292
        %v296 = vmul.f32 %v255, %v292
        %v297 = vmul.f32 %v258, %v292
        %v298 = vmul.f32 %v261, %v292
        %v299 = vmul.f32 %v264, %v292
        %v300 = vmul.f32 %v267, %v292
        %v301 = vmul.f32 %v270, %v292
        %v302 = vmul.f32 %v273, %v292
        %v303 = vmul.f32 %v276, %v292
        %v304 = vmul.f32 %v279, %v292
        %v305 = vmul.f32 %v282, %v292
        %v306 = vmul.f32 %v285, %v292
        %v307 = vmul.f32 %v288, %v292
        %v308 = vmul.f32 %v291, %v292
        %v309 = vsub.f32 %v227, %v293
        %v310 = vsub.f32 %v228, %v294
        %v311 = vsub.f32 %v229, %v295
        %v312 = vsub.f32 %v230, %v296
        %v313 = vsub.f32 %v231, %v297
        %v314 = vsub.f32 %v232, %v298
        %v315 = vsub.f32 %v233, %v299
        %v316 = vsub.f32 %v234, %v300
        %v317 = vsub.f32 %v235, %v301
        %v318 = vsub.f32 %v236, %v302
        %v319 = vsub.f32 %v237, %v303
        %v320 = vsub.f32 %v238, %v304
        %v321 = vsub.f32 %v239, %v305
        %v322 = vsub.f32 %v240, %v306
        %v323 = vsub.f32 %v241, %v307
        %v324 = vsub.f32 %v242, %v308
        %v325 = vmul.f32 %v309, %v309
        %v326 = vmul.f32 %v310, %v310
        %v327 = vmul.f32 %v311, %v311
        %v328 = vmul.f32 %v312, %v312
        %v329 = vmul.f32 %v313, %v313
        %v330 = vmul.f32 %v314, %v314
        %v331 = vmul.f32 %v315, %v315
        %v332 = vmul.f32 %v316, %v316
        %v333 = vmul.f32 %v317, %v317
        %v334 = vmul.f32 %v318, %v318
        %v335 = vmul.f32 %v319, %v319
        %v336 = vmul.f32 %v320, %v320
        %v337 = vmul.f32 %v321, %v321
        %v338 = vmul.f32 %v322, %v322
        %v339 = vmul.f32 %v323, %v323
        %v340 = vmul.f32 %v324, %v324
        %v341 = vsel %vm243, %v325, 0.0
        %342 = vadd.xlane.f32.xlu0 %v341
        %v343 = vpop.xlane.xlu0 %342
        %v344 = vsel %vm243, %v326, 0.0
        %345 = vadd.xlane.f32.xlu0 %v344
        %v346 = vpop.xlane.xlu0 %345
        %v347 = vsel %vm243, %v327, 0.0
        %348 = vadd.xlane.f32.xlu0 %v347
        %v349 = vpop.xlane.xlu0 %348
        %v350 = vsel %vm243, %v328, 0.0
        %351 = vadd.xlane.f32.xlu0 %v350
        %v352 = vpop.xlane.xlu0 %351
        %v353 = vsel %vm243, %v329, 0.0
        %354 = vadd.xlane.f32.xlu0 %v353
        %v355 = vpop.xlane.xlu0 %354
        %v356 = vsel %vm243, %v330, 0.0
        %357 = vadd.xlane.f32.xlu0 %v356
        %v358 = vpop.xlane.xlu0 %357
        %v359 = vsel %vm243, %v331, 0.0
        %360 = vadd.xlane.f32.xlu0 %v359
        %v361 = vpop.xlane.xlu0 %360
        %v362 = vsel %vm243, %v332, 0.0
        %363 = vadd.xlane.f32.xlu0 %v362
        %v364 = vpop.xlane.xlu0 %363
        %v365 = vsel %vm243, %v333, 0.0
        %366 = vadd.xlane.f32.xlu0 %v365
        %v367 = vpop.xlane.xlu0 %366
        %v368 = vsel %vm243, %v334, 0.0
        %369 = vadd.xlane.f32.xlu0 %v368
        %v370 = vpop.xlane.xlu0 %369
        %v371 = vsel %vm243, %v335, 0.0
        %372 = vadd.xlane.f32.xlu0 %v371
        %v373 = vpop.xlane.xlu0 %372
        %v374 = vsel %vm243, %v336, 0.0
        %375 = vadd.xlane.f32.xlu0 %v374
        %v376 = vpop.xlane.xlu0 %375
        %v377 = vsel %vm243, %v337, 0.0
        %378 = vadd.xlane.f32.xlu0 %v377
        %v379 = vpop.xlane.xlu0 %378
        %v380 = vsel %vm243, %v338, 0.0
        %381 = vadd.xlane.f32.xlu0 %v380
        %v382 = vpop.xlane.xlu0 %381
        %v383 = vsel %vm243, %v339, 0.0
        %384 = vadd.xlane.f32.xlu0 %v383
        %v385 = vpop.xlane.xlu0 %384
        %v386 = vsel %vm243, %v340, 0.0
        %387 = vadd.xlane.f32.xlu0 %v386
        %v388 = vpop.xlane.xlu0 %387
        %v389 = vmul.f32 %v343, %v292
        %v390 = vmul.f32 %v346, %v292
        %v391 = vmul.f32 %v349, %v292
        %v392 = vmul.f32 %v352, %v292
        %v393 = vmul.f32 %v355, %v292
        %v394 = vmul.f32 %v358, %v292
        %v395 = vmul.f32 %v361, %v292
        %v396 = vmul.f32 %v364, %v292
        %v397 = vmul.f32 %v367, %v292
        %v398 = vmul.f32 %v370, %v292
        %v399 = vmul.f32 %v373, %v292
        %v400 = vmul.f32 %v376, %v292
        %v401 = vmul.f32 %v379, %v292
        %v402 = vmul.f32 %v382, %v292
        %v403 = vmul.f32 %v385, %v292
        %v404 = vmul.f32 %v388, %v292
        %v405 = vadd.f32 %v389, 1e-05
        %v406 = vadd.f32 %v390, 1e-05
        %v407 = vadd.f32 %v391, 1e-05
        %v408 = vadd.f32 %v392, 1e-05
        %v409 = vadd.f32 %v393, 1e-05
        %v410 = vadd.f32 %v394, 1e-05
        %v411 = vadd.f32 %v395, 1e-05
        %v412 = vadd.f32 %v396, 1e-05
        %v413 = vadd.f32 %v397, 1e-05
        %v414 = vadd.f32 %v398, 1e-05
        %v415 = vadd.f32 %v399, 1e-05
        %v416 = vadd.f32 %v400, 1e-05
        %v417 = vadd.f32 %v401, 1e-05
        %v418 = vadd.f32 %v402, 1e-05
        %v419 = vadd.f32 %v403, 1e-05
        %v420 = vadd.f32 %v404, 1e-05
        %v421 = vrsqrt.pop %v405
        %v422 = vrsqrt.pop %v406
        %v423 = vrsqrt.pop %v407
        %v424 = vrsqrt.pop %v408
        %v425 = vrsqrt.pop %v409
        %v426 = vrsqrt.pop %v410
        %v427 = vrsqrt.pop %v411
        %v428 = vrsqrt.pop %v412
        %v429 = vrsqrt.pop %v413
        %v430 = vrsqrt.pop %v414
        %v431 = vrsqrt.pop %v415
        %v432 = vrsqrt.pop %v416
        %v433 = vrsqrt.pop %v417
        %v434 = vrsqrt.pop %v418
        %v435 = vrsqrt.pop %v419
        %v436 = vrsqrt.pop %v420
        %v437 = vmul.f32 %v309, %v421
        %v438 = vmul.f32 %v310, %v422
        %v439 = vmul.f32 %v311, %v423
        %v440 = vmul.f32 %v312, %v424
        %v441 = vmul.f32 %v313, %v425
        %v442 = vmul.f32 %v314, %v426
        %v443 = vmul.f32 %v315, %v427
        %v444 = vmul.f32 %v316, %v428
        %v445 = vmul.f32 %v317, %v429
        %v446 = vmul.f32 %v318, %v430
        %v447 = vmul.f32 %v319, %v431
        %v448 = vmul.f32 %v320, %v432
        %v449 = vmul.f32 %v321, %v433
        %v450 = vmul.f32 %v322, %v434
        %v451 = vmul.f32 %v323, %v435
        %v452 = vmul.f32 %v324, %v436
        %v453 = vpack.c.bf16 %v438, %v437
        %v454 = vpack.c.bf16 %v440, %v439
        %v455 = vpack.c.bf16 %v442, %v441
        %v456 = vpack.c.bf16 %v444, %v443
        %v457 = vpack.c.bf16 %v446, %v445
        %v458 = vpack.c.bf16 %v448, %v447
        %v459 = vpack.c.bf16 %v450, %v449
        %v460 = vpack.c.bf16 %v452, %v451
        %v461 = vld [vmem:[%s1] sm:$0xff]
        %v462 = vld [vmem:[%s1 + $0x8] sm:$0xf]
        %v463 = vld [vmem:[%s1 + $0xc] sm:$0xff]
        %v464 = vld [vmem:[%s1 + $0x14] sm:$0xf]
        %v465 = vld [vmem:[%s1 + $0x18] sm:$0xff]
        %v466 = vld [vmem:[%s1 + $0x20] sm:$0xf]
        %v467 = vld [vmem:[%s1 + $0x24] sm:$0xff]
        %v468 = vld [vmem:[%s1 + $0x2c] sm:$0xf]
        %v469 = vld [vmem:[%s1 + $0x30] sm:$0xff]
        %v470 = vld [vmem:[%s1 + $0x38] sm:$0xf]
        %v471 = vld [vmem:[%s1 + $0x3c] sm:$0xff]
        %v472 = vld [vmem:[%s1 + $0x44] sm:$0xf]
        %v473 = vld [vmem:[%s1 + $0x48] sm:$0xff]
        %v474 = vld [vmem:[%s1 + $0x50] sm:$0xf]
        %v475 = vld [vmem:[%s1 + $0x54] sm:$0xff]
        %v476 = vld [vmem:[%s1 + $0x5c] sm:$0xf]
        %v477 = vld [vmem:[%s2] sm:$0x7]
        %v478 = vld [vmem:[%s3] sm:$0xff]
        %v479 = vld [vmem:[%s3 + $0x8] sm:$0xf]
        %v480 = vld [vmem:[%s3 + $0xc] sm:$0xff]
        %v481 = vld [vmem:[%s3 + $0x14] sm:$0xf]
        %v482 = vld [vmem:[%s3 + $0x18] sm:$0xff]
        %v483 = vld [vmem:[%s3 + $0x20] sm:$0xf]
        %v484 = vld [vmem:[%s3 + $0x24] sm:$0xff]
        %v485 = vld [vmem:[%s3 + $0x2c] sm:$0xf]
        %v486 = vld [vmem:[%s3 + $0x30] sm:$0xff]
        %v487 = vld [vmem:[%s3 + $0x38] sm:$0xf]
        %v488 = vld [vmem:[%s3 + $0x3c] sm:$0xff]
        %v489 = vld [vmem:[%s3 + $0x44] sm:$0xf]
        %v490 = vld [vmem:[%s3 + $0x48] sm:$0xff]
        %v491 = vld [vmem:[%s3 + $0x50] sm:$0xf]
        %v492 = vld [vmem:[%s3 + $0x54] sm:$0xff]
        %v493 = vld [vmem:[%s3 + $0x5c] sm:$0xf]
        %v494 = vld [vmem:[%s4] sm:$0x7]
        %v496 = vlaneseq
        %v497 = vshrl.u32 %v496, 7
        %v498 = vsub.s32 0, %v497
        %v499 = vrot.slane %v477, %v498
        %v500 = vlaneseq
        %v501 = vshrl.u32 %v500, 7
        %v502 = vsub.s32 1, %v501
        %v503 = vrot.slane %v477, %v502
        %v504 = vlaneseq
        %v505 = vshrl.u32 %v504, 7
        %v506 = vsub.s32 2, %v505
        %v507 = vrot.slane %v477, %v506
        %v527 = vunpack.c.l.b16 %v461
        %v528 = vunpack.c.h.b16 %v461
        %v529 = vunpack.c.l.b16 %v462
        %v530 = vunpack.c.l.b16 %v463
        %v531 = vunpack.c.h.b16 %v463
        %v532 = vunpack.c.l.b16 %v464
        %v533 = vunpack.c.l.b16 %v465
        %v534 = vunpack.c.h.b16 %v465
        %v535 = vunpack.c.l.b16 %v466
        %v536 = vunpack.c.l.b16 %v467
        %v537 = vunpack.c.h.b16 %v467
        %v538 = vunpack.c.l.b16 %v468
        %v539 = vunpack.c.l.b16 %v469
        %v540 = vunpack.c.h.b16 %v469
        %v541 = vunpack.c.l.b16 %v470
        %v542 = vunpack.c.l.b16 %v471
        %v543 = vunpack.c.h.b16 %v471
        %v544 = vunpack.c.l.b16 %v472
        %v545 = vunpack.c.l.b16 %v473
        %v546 = vunpack.c.h.b16 %v473
        %v547 = vunpack.c.l.b16 %v474
        %v548 = vunpack.c.l.b16 %v475
        %v549 = vunpack.c.h.b16 %v475
        %v550 = vunpack.c.l.b16 %v476
        %v551 = vpack.c.b16 %v530, %v527
        %v552 = vpack.c.b16 %v531, %v528
        %v553 = vpack.c.b16 %v532, %v529
        %v554 = vpack.c.b16 %v536, %v533
        %v555 = vpack.c.b16 %v537, %v534
        %v556 = vpack.c.b16 %v538, %v535
        %v557 = vpack.c.b16 %v542, %v539
        %v558 = vpack.c.b16 %v543, %v540
        %v559 = vpack.c.b16 %v544, %v541
        %v560 = vpack.c.b16 %v548, %v545
        %v561 = vpack.c.b16 %v549, %v546
        %v562 = vpack.c.b16 %v550, %v547
        %v576 = vsel %vm243, %v453, 0
        %v579 = vsel %vm243, %v454, 0
        %v582 = vsel %vm243, %v455, 0
        %v585 = vsel %vm243, %v456, 0
        %v588 = vsel %vm243, %v457, 0
        %v591 = vsel %vm243, %v458, 0
        %v594 = vsel %vm243, %v459, 0
        %v597 = vsel %vm243, %v460, 0
        %599 = vmatprep.subr.bf16.mxu0 %v552
        %600 = vmatpush1.bf16.msra.mxu0 %v551
        %601 = vmatprep.subr.bf16.mxu0 %v555
        %602 = vmatpush1.bf16.msra.mxu0 %v554
        %603 = vmatprep.subr.bf16.mxu0 %v558
        %604 = vmatpush1.bf16.msra.mxu0 %v557
        %605 = vmatprep.subr.bf16.mxu0 %v561
        %606 = vmatpush1.bf16.msra.mxu0 %v560
        %607 = vmatprep.subr.bf16.mxu0 0
        %608 = vmatpush1.bf16.msra.mxu0 0
        %609 = vmatprep.subr.bf16.mxu0 0
        %610 = vmatpush1.bf16.msra.mxu0 0
        %611 = vmatprep.subr.bf16.mxu0 0
        %612 = vmatpush1.bf16.msra.mxu0 0
        %613 = vmatprep.subr.bf16.mxu0 0
        %614 = vmatpush1.bf16.msra.mxu0 0
        %615 = vmatprep.subr.bf16.mxu0 0
        %616 = vmatpush1.bf16.msra.mxu0 0
        %617 = vmatprep.subr.bf16.mxu0 0
        %618 = vmatpush1.bf16.msra.mxu0 0
        %619 = vmatprep.subr.bf16.mxu0 0
        %620 = vmatpush1.bf16.msra.mxu0 0
        %621 = vmatprep.subr.bf16.mxu0 0
        %622 = vmatpush1.bf16.msra.mxu0 0
        %623 = vmatprep.subr.bf16.mxu0 0
        %624 = vmatpush1.bf16.msra.mxu0 0
        %625 = vmatprep.subr.bf16.mxu0 0
        %626 = vmatpush1.bf16.msra.mxu0 0
        %627 = vmatprep.subr.bf16.mxu0 0
        %628 = vmatpush1.bf16.msra.mxu0 0
        %629 = vmatprep.subr.bf16.mxu0 0
        %630 = vmatpush1.bf16.msra.mxu0 0
        %631 = vmatprep.mubr.bf16.mxu0 0
        %632 = vmatmul.mubr.bf16.gmra.mrb[0].mxu0 %v576
        %v633 = vpop.f32.mrb[0].mxu0
        %v634 = vadd.f32 %v499, %v633
        %v635 = vpop.f32.mrb[0].mxu0
        %v636 = vadd.f32 %v503, %v635
        %v637 = vpop.f32.mrb[0].mxu0
        %v638 = vadd.f32 %v499, %v637
        %v639 = vpop.f32.mrb[0].mxu0
        %v640 = vadd.f32 %v503, %v639
        %641 = vmatprep.mubr.bf16.mxu0 0
        %642 = vmatmul.mubr.bf16.gmra.mrb[0].mxu0 %v579
        %v643 = vpop.f32.mrb[0].mxu0
        %v644 = vadd.f32 %v499, %v643
        %v645 = vpop.f32.mrb[0].mxu0
        %v646 = vadd.f32 %v503, %v645
        %v647 = vpop.f32.mrb[0].mxu0
        %v648 = vadd.f32 %v499, %v647
        %v649 = vpop.f32.mrb[0].mxu0
        %v650 = vadd.f32 %v503, %v649
        %651 = vmatprep.mubr.bf16.mxu0 0
        %652 = vmatmul.mubr.bf16.gmra.mrb[0].mxu0 %v582
        %v653 = vpop.f32.mrb[0].mxu0
        %v654 = vadd.f32 %v499, %v653
        %v655 = vpop.f32.mrb[0].mxu0
        %v656 = vadd.f32 %v503, %v655
        %v657 = vpop.f32.mrb[0].mxu0
        %v658 = vadd.f32 %v499, %v657
        %v659 = vpop.f32.mrb[0].mxu0
        %v660 = vadd.f32 %v503, %v659
        %661 = vmatprep.mubr.bf16.mxu0 0
        %662 = vmatmul.mubr.bf16.gmra.mrb[0].mxu0 %v585
        %v663 = vpop.f32.mrb[0].mxu0
        %v664 = vadd.f32 %v499, %v663
        %v665 = vpop.f32.mrb[0].mxu0
        %v666 = vadd.f32 %v503, %v665
        %v667 = vpop.f32.mrb[0].mxu0
        %v668 = vadd.f32 %v499, %v667
        %v669 = vpop.f32.mrb[0].mxu0
        %v670 = vadd.f32 %v503, %v669
        %671 = vmatprep.mubr.bf16.mxu0 0
        %672 = vmatmul.mubr.bf16.gmra.mrb[0].mxu0 %v588
        %v673 = vpop.f32.mrb[0].mxu0
        %v674 = vadd.f32 %v499, %v673
        %v675 = vpop.f32.mrb[0].mxu0
        %v676 = vadd.f32 %v503, %v675
        %v677 = vpop.f32.mrb[0].mxu0
        %v678 = vadd.f32 %v499, %v677
        %v679 = vpop.f32.mrb[0].mxu0
        %v680 = vadd.f32 %v503, %v679
        %681 = vmatprep.mubr.bf16.mxu0 0
        %682 = vmatmul.mubr.bf16.gmra.mrb[0].mxu0 %v591
        %v683 = vpop.f32.mrb[0].mxu0
        %v684 = vadd.f32 %v499, %v683
        %v685 = vpop.f32.mrb[0].mxu0
        %v686 = vadd.f32 %v503, %v685
        %v687 = vpop.f32.mrb[0].mxu0
        %v688 = vadd.f32 %v499, %v687
        %v689 = vpop.f32.mrb[0].mxu0
        %v690 = vadd.f32 %v503, %v689
        %691 = vmatprep.mubr.bf16.mxu0 0
        %692 = vmatmul.mubr.bf16.gmra.mrb[0].mxu0 %v594
        %v693 = vpop.f32.mrb[0].mxu0
        %v694 = vadd.f32 %v499, %v693
        %v695 = vpop.f32.mrb[0].mxu0
        %v696 = vadd.f32 %v503, %v695
        %v697 = vpop.f32.mrb[0].mxu0
        %v698 = vadd.f32 %v499, %v697
        %v699 = vpop.f32.mrb[0].mxu0
        %v700 = vadd.f32 %v503, %v699
        %701 = vmatprep.mubr.bf16.mxu0 0
        %702 = vmatmul.mubr.bf16.gmra.mrb[0].mxu0 %v597
        %v703 = vpop.f32.mrb[0].mxu0
        %v704 = vadd.f32 %v499, %v703
        %v705 = vpop.f32.mrb[0].mxu0
        %v706 = vadd.f32 %v503, %v705
        %v707 = vpop.f32.mrb[0].mxu0
        %v708 = vadd.f32 %v499, %v707
        %v709 = vpop.f32.mrb[0].mxu0
        %v710 = vadd.f32 %v503, %v709
        %711 = vdwg.mxu0
        %712 = vmatprep.subr.bf16.mxu0 0
        %713 = vmatpush1.bf16.msra.mxu0 %v553
        %714 = vmatprep.subr.bf16.mxu0 0
        %715 = vmatpush1.bf16.msra.mxu0 %v556
        %716 = vmatprep.subr.bf16.mxu0 0
        %717 = vmatpush1.bf16.msra.mxu0 %v559
        %718 = vmatprep.subr.bf16.mxu0 0
        %719 = vmatpush1.bf16.msra.mxu0 %v562
        %720 = vmatprep.subr.bf16.mxu0 0
        %721 = vmatpush1.bf16.msra.mxu0 0
        %722 = vmatprep.subr.bf16.mxu0 0
        %723 = vmatpush1.bf16.msra.mxu0 0
        %724 = vmatprep.subr.bf16.mxu0 0
        %725 = vmatpush1.bf16.msra.mxu0 0
        %726 = vmatprep.subr.bf16.mxu0 0
        %727 = vmatpush1.bf16.msra.mxu0 0
        %728 = vmatprep.subr.bf16.mxu0 0
        %729 = vmatpush1.bf16.msra.mxu0 0
        %730 = vmatprep.subr.bf16.mxu0 0
        %731 = vmatpush1.bf16.msra.mxu0 0
        %732 = vmatprep.subr.bf16.mxu0 0
        %733 = vmatpush1.bf16.msra.mxu0 0
        %734 = vmatprep.subr.bf16.mxu0 0
        %735 = vmatpush1.bf16.msra.mxu0 0
        %736 = vmatprep.subr.bf16.mxu0 0
        %737 = vmatpush1.bf16.msra.mxu0 0
        %738 = vmatprep.subr.bf16.mxu0 0
        %739 = vmatpush1.bf16.msra.mxu0 0
        %740 = vmatprep.subr.bf16.mxu0 0
        %741 = vmatpush1.bf16.msra.mxu0 0
        %742 = vmatprep.subr.bf16.mxu0 0
        %743 = vmatpush1.bf16.msra.mxu0 0
        %744 = vmatprep.mubr.bf16.mxu0 0
        %745 = vmatmul.mubr.bf16.gmra.mrb[0].mxu0 %v576
        %v746 = vpop.f32.mrb[0].mxu0
        %v747 = vadd.f32 %v507, %v746
        %v748 = vpop.f32.mrb[0].mxu0
        %v749 = vpop.f32.mrb[0].mxu0
        %v750 = vadd.f32 %v507, %v749
        %v751 = vpop.f32.mrb[0].mxu0
        %752 = vmatprep.mubr.bf16.mxu0 0
        %753 = vmatmul.mubr.bf16.gmra.mrb[0].mxu0 %v579
        %v754 = vpop.f32.mrb[0].mxu0
        %v755 = vadd.f32 %v507, %v754
        %v756 = vpop.f32.mrb[0].mxu0
        %v757 = vpop.f32.mrb[0].mxu0
        %v758 = vadd.f32 %v507, %v757
        %v759 = vpop.f32.mrb[0].mxu0
        %760 = vmatprep.mubr.bf16.mxu0 0
        %761 = vmatmul.mubr.bf16.gmra.mrb[0].mxu0 %v582
        %v762 = vpop.f32.mrb[0].mxu0
        %v763 = vadd.f32 %v507, %v762
        %v764 = vpop.f32.mrb[0].mxu0
        %v765 = vpop.f32.mrb[0].mxu0
        %v766 = vadd.f32 %v507, %v765
        %v767 = vpop.f32.mrb[0].mxu0
        %768 = vmatprep.mubr.bf16.mxu0 0
        %769 = vmatmul.mubr.bf16.gmra.mrb[0].mxu0 %v585
        %v770 = vpop.f32.mrb[0].mxu0
        %v771 = vadd.f32 %v507, %v770
        %v772 = vpop.f32.mrb[0].mxu0
        %v773 = vpop.f32.mrb[0].mxu0
        %v774 = vadd.f32 %v507, %v773
        %v775 = vpop.f32.mrb[0].mxu0
        %776 = vmatprep.mubr.bf16.mxu0 0
        %777 = vmatmul.mubr.bf16.gmra.mrb[0].mxu0 %v588
        %v778 = vpop.f32.mrb[0].mxu0
        %v779 = vadd.f32 %v507, %v778
        %v780 = vpop.f32.mrb[0].mxu0
        %v781 = vpop.f32.mrb[0].mxu0
        %v782 = vadd.f32 %v507, %v781
        %v783 = vpop.f32.mrb[0].mxu0
        %784 = vmatprep.mubr.bf16.mxu0 0
        %785 = vmatmul.mubr.bf16.gmra.mrb[0].mxu0 %v591
        %v786 = vpop.f32.mrb[0].mxu0
        %v787 = vadd.f32 %v507, %v786
        %v788 = vpop.f32.mrb[0].mxu0
        %v789 = vpop.f32.mrb[0].mxu0
        %v790 = vadd.f32 %v507, %v789
        %v791 = vpop.f32.mrb[0].mxu0
        %792 = vmatprep.mubr.bf16.mxu0 0
        %793 = vmatmul.mubr.bf16.gmra.mrb[0].mxu0 %v594
        %v794 = vpop.f32.mrb[0].mxu0
        %v795 = vadd.f32 %v507, %v794
        %v796 = vpop.f32.mrb[0].mxu0
        %v797 = vpop.f32.mrb[0].mxu0
        %v798 = vadd.f32 %v507, %v797
        %v799 = vpop.f32.mrb[0].mxu0
        %800 = vmatprep.mubr.bf16.mxu0 0
        %801 = vmatmul.mubr.bf16.gmra.mrb[0].mxu0 %v597
        %v802 = vpop.f32.mrb[0].mxu0
        %v803 = vadd.f32 %v507, %v802
        %v804 = vpop.f32.mrb[0].mxu0
        %v805 = vpop.f32.mrb[0].mxu0
        %v806 = vadd.f32 %v507, %v805
        %v807 = vpop.f32.mrb[0].mxu0
        %808 = vdwg.mxu0
        %v810 = vlaneseq
        %v811 = vshrl.u32 %v810, 7
        %v812 = vsub.s32 0, %v811
        %v813 = vrot.slane %v494, %v812
        %v814 = vlaneseq
        %v815 = vshrl.u32 %v814, 7
        %v816 = vsub.s32 1, %v815
        %v817 = vrot.slane %v494, %v816
        %v818 = vlaneseq
        %v819 = vshrl.u32 %v818, 7
        %v820 = vsub.s32 2, %v819
        %v821 = vrot.slane %v494, %v820
        %v841 = vunpack.c.l.b16 %v478
        %v842 = vunpack.c.h.b16 %v478
        %v843 = vunpack.c.l.b16 %v479
        %v844 = vunpack.c.l.b16 %v480
        %v845 = vunpack.c.h.b16 %v480
        %v846 = vunpack.c.l.b16 %v481
        %v847 = vunpack.c.l.b16 %v482
        %v848 = vunpack.c.h.b16 %v482
        %v849 = vunpack.c.l.b16 %v483
        %v850 = vunpack.c.l.b16 %v484
        %v851 = vunpack.c.h.b16 %v484
        %v852 = vunpack.c.l.b16 %v485
        %v853 = vunpack.c.l.b16 %v486
        %v854 = vunpack.c.h.b16 %v486
        %v855 = vunpack.c.l.b16 %v487
        %v856 = vunpack.c.l.b16 %v488
        %v857 = vunpack.c.h.b16 %v488
        %v858 = vunpack.c.l.b16 %v489
        %v859 = vunpack.c.l.b16 %v490
        %v860 = vunpack.c.h.b16 %v490
        %v861 = vunpack.c.l.b16 %v491
        %v862 = vunpack.c.l.b16 %v492
        %v863 = vunpack.c.h.b16 %v492
        %v864 = vunpack.c.l.b16 %v493
        %v865 = vpack.c.b16 %v844, %v841
        %v866 = vpack.c.b16 %v845, %v842
        %v867 = vpack.c.b16 %v846, %v843
        %v868 = vpack.c.b16 %v850, %v847
        %v869 = vpack.c.b16 %v851, %v848
        %v870 = vpack.c.b16 %v852, %v849
        %v871 = vpack.c.b16 %v856, %v853
        %v872 = vpack.c.b16 %v857, %v854
        %v873 = vpack.c.b16 %v858, %v855
        %v874 = vpack.c.b16 %v862, %v859
        %v875 = vpack.c.b16 %v863, %v860
        %v876 = vpack.c.b16 %v864, %v861
        %889 = vmatprep.subr.bf16.mxu0 %v866
        %890 = vmatpush1.bf16.msra.mxu0 %v865
        %891 = vmatprep.subr.bf16.mxu0 %v869
        %892 = vmatpush1.bf16.msra.mxu0 %v868
        %893 = vmatprep.subr.bf16.mxu0 %v872
        %894 = vmatpush1.bf16.msra.mxu0 %v871
        %895 = vmatprep.subr.bf16.mxu0 %v875
        %896 = vmatpush1.bf16.msra.mxu0 %v874
        %897 = vmatprep.subr.bf16.mxu0 0
        %898 = vmatpush1.bf16.msra.mxu0 0
        %899 = vmatprep.subr.bf16.mxu0 0
        %900 = vmatpush1.bf16.msra.mxu0 0
        %901 = vmatprep.subr.bf16.mxu0 0
        %902 = vmatpush1.bf16.msra.mxu0 0
        %903 = vmatprep.subr.bf16.mxu0 0
        %904 = vmatpush1.bf16.msra.mxu0 0
        %905 = vmatprep.subr.bf16.mxu0 0
        %906 = vmatpush1.bf16.msra.mxu0 0
        %907 = vmatprep.subr.bf16.mxu0 0
        %908 = vmatpush1.bf16.msra.mxu0 0
        %909 = vmatprep.subr.bf16.mxu0 0
        %910 = vmatpush1.bf16.msra.mxu0 0
        %911 = vmatprep.subr.bf16.mxu0 0
        %912 = vmatpush1.bf16.msra.mxu0 0
        %913 = vmatprep.subr.bf16.mxu0 0
        %914 = vmatpush1.bf16.msra.mxu0 0
        %915 = vmatprep.subr.bf16.mxu0 0
        %916 = vmatpush1.bf16.msra.mxu0 0
        %917 = vmatprep.subr.bf16.mxu0 0
        %918 = vmatpush1.bf16.msra.mxu0 0
        %919 = vmatprep.subr.bf16.mxu0 0
        %920 = vmatpush1.bf16.msra.mxu0 0
        %921 = vmatprep.mubr.bf16.mxu0 0
        %922 = vmatmul.mubr.bf16.gmra.mrb[0].mxu0 %v576
        %v923 = vpop.f32.mrb[0].mxu0
        %v924 = vadd.f32 %v813, %v923
        %v925 = vpop.f32.mrb[0].mxu0
        %v926 = vadd.f32 %v817, %v925
        %v927 = vpop.f32.mrb[0].mxu0
        %v928 = vadd.f32 %v813, %v927
        %v929 = vpop.f32.mrb[0].mxu0
        %v930 = vadd.f32 %v817, %v929
        %931 = vmatprep.mubr.bf16.mxu0 0
        %932 = vmatmul.mubr.bf16.gmra.mrb[0].mxu0 %v579
        %v933 = vpop.f32.mrb[0].mxu0
        %v934 = vadd.f32 %v813, %v933
        %v935 = vpop.f32.mrb[0].mxu0
        %v936 = vadd.f32 %v817, %v935
        %v937 = vpop.f32.mrb[0].mxu0
        %v938 = vadd.f32 %v813, %v937
        %v939 = vpop.f32.mrb[0].mxu0
        %v940 = vadd.f32 %v817, %v939
        %941 = vmatprep.mubr.bf16.mxu0 0
        %942 = vmatmul.mubr.bf16.gmra.mrb[0].mxu0 %v582
        %v943 = vpop.f32.mrb[0].mxu0
        %v944 = vadd.f32 %v813, %v943
        %v945 = vpop.f32.mrb[0].mxu0
        %v946 = vadd.f32 %v817, %v945
        %v947 = vpop.f32.mrb[0].mxu0
        %v948 = vadd.f32 %v813, %v947
        %v949 = vpop.f32.mrb[0].mxu0
        %v950 = vadd.f32 %v817, %v949
        %951 = vmatprep.mubr.bf16.mxu0 0
        %952 = vmatmul.mubr.bf16.gmra.mrb[0].mxu0 %v585
        %v953 = vpop.f32.mrb[0].mxu0
        %v954 = vadd.f32 %v813, %v953
        %v955 = vpop.f32.mrb[0].mxu0
        %v956 = vadd.f32 %v817, %v955
        %v957 = vpop.f32.mrb[0].mxu0
        %v958 = vadd.f32 %v813, %v957
        %v959 = vpop.f32.mrb[0].mxu0
        %v960 = vadd.f32 %v817, %v959
        %961 = vmatprep.mubr.bf16.mxu0 0
        %962 = vmatmul.mubr.bf16.gmra.mrb[0].mxu0 %v588
        %v963 = vpop.f32.mrb[0].mxu0
        %v964 = vadd.f32 %v813, %v963
        %v965 = vpop.f32.mrb[0].mxu0
        %v966 = vadd.f32 %v817, %v965
        %v967 = vpop.f32.mrb[0].mxu0
        %v968 = vadd.f32 %v813, %v967
        %v969 = vpop.f32.mrb[0].mxu0
        %v970 = vadd.f32 %v817, %v969
        %971 = vmatprep.mubr.bf16.mxu0 0
        %972 = vmatmul.mubr.bf16.gmra.mrb[0].mxu0 %v591
        %v973 = vpop.f32.mrb[0].mxu0
        %v974 = vadd.f32 %v813, %v973
        %v975 = vpop.f32.mrb[0].mxu0
        %v976 = vadd.f32 %v817, %v975
        %v977 = vpop.f32.mrb[0].mxu0
        %v978 = vadd.f32 %v813, %v977
        %v979 = vpop.f32.mrb[0].mxu0
        %v980 = vadd.f32 %v817, %v979
        %981 = vmatprep.mubr.bf16.mxu0 0
        %982 = vmatmul.mubr.bf16.gmra.mrb[0].mxu0 %v594
        %v983 = vpop.f32.mrb[0].mxu0
        %v984 = vadd.f32 %v813, %v983
        %v985 = vpop.f32.mrb[0].mxu0
        %v986 = vadd.f32 %v817, %v985
        %v987 = vpop.f32.mrb[0].mxu0
        %v988 = vadd.f32 %v813, %v987
        %v989 = vpop.f32.mrb[0].mxu0
        %v990 = vadd.f32 %v817, %v989
        %991 = vmatprep.mubr.bf16.mxu0 0
        %992 = vmatmul.mubr.bf16.gmra.mrb[0].mxu0 %v597
        %v993 = vpop.f32.mrb[0].mxu0
        %v994 = vadd.f32 %v813, %v993
        %v995 = vpop.f32.mrb[0].mxu0
        %v996 = vadd.f32 %v817, %v995
        %v997 = vpop.f32.mrb[0].mxu0
        %v998 = vadd.f32 %v813, %v997
        %v999 = vpop.f32.mrb[0].mxu0
        %v1000 = vadd.f32 %v817, %v999
        %1001 = vdwg.mxu0
        %1002 = vmatprep.subr.bf16.mxu0 0
        %1003 = vmatpush1.bf16.msra.mxu0 %v867
        %1004 = vmatprep.subr.bf16.mxu0 0
        %1005 = vmatpush1.bf16.msra.mxu0 %v870
        %1006 = vmatprep.subr.bf16.mxu0 0
        %1007 = vmatpush1.bf16.msra.mxu0 %v873
        %1008 = vmatprep.subr.bf16.mxu0 0
        %1009 = vmatpush1.bf16.msra.mxu0 %v876
        %1010 = vmatprep.subr.bf16.mxu0 0
        %1011 = vmatpush1.bf16.msra.mxu0 0
        %1012 = vmatprep.subr.bf16.mxu0 0
        %1013 = vmatpush1.bf16.msra.mxu0 0
        %1014 = vmatprep.subr.bf16.mxu0 0
        %1015 = vmatpush1.bf16.msra.mxu0 0
        %1016 = vmatprep.subr.bf16.mxu0 0
        %1017 = vmatpush1.bf16.msra.mxu0 0
        %1018 = vmatprep.subr.bf16.mxu0 0
        %1019 = vmatpush1.bf16.msra.mxu0 0
        %1020 = vmatprep.subr.bf16.mxu0 0
        %1021 = vmatpush1.bf16.msra.mxu0 0
        %1022 = vmatprep.subr.bf16.mxu0 0
        %1023 = vmatpush1.bf16.msra.mxu0 0
        %1024 = vmatprep.subr.bf16.mxu0 0
        %1025 = vmatpush1.bf16.msra.mxu0 0
        %1026 = vmatprep.subr.bf16.mxu0 0
        %1027 = vmatpush1.bf16.msra.mxu0 0
        %1028 = vmatprep.subr.bf16.mxu0 0
        %1029 = vmatpush1.bf16.msra.mxu0 0
        %1030 = vmatprep.subr.bf16.mxu0 0
        %1031 = vmatpush1.bf16.msra.mxu0 0
        %1032 = vmatprep.subr.bf16.mxu0 0
        %1033 = vmatpush1.bf16.msra.mxu0 0
        %1034 = vmatprep.mubr.bf16.mxu0 0
        %1035 = vmatmul.mubr.bf16.gmra.mrb[0].mxu0 %v576
        %v1036 = vpop.f32.mrb[0].mxu0
        %v1037 = vadd.f32 %v821, %v1036
        %v1038 = vpop.f32.mrb[0].mxu0
        %v1039 = vpop.f32.mrb[0].mxu0
        %v1040 = vadd.f32 %v821, %v1039
        %v1041 = vpop.f32.mrb[0].mxu0
        %1042 = vmatprep.mubr.bf16.mxu0 0
        %1043 = vmatmul.mubr.bf16.gmra.mrb[0].mxu0 %v579
        %v1044 = vpop.f32.mrb[0].mxu0
        %v1045 = vadd.f32 %v821, %v1044
        %v1046 = vpop.f32.mrb[0].mxu0
        %v1047 = vpop.f32.mrb[0].mxu0
        %v1048 = vadd.f32 %v821, %v1047
        %v1049 = vpop.f32.mrb[0].mxu0
        %1050 = vmatprep.mubr.bf16.mxu0 0
        %1051 = vmatmul.mubr.bf16.gmra.mrb[0].mxu0 %v582
        %v1052 = vpop.f32.mrb[0].mxu0
        %v1053 = vadd.f32 %v821, %v1052
        %v1054 = vpop.f32.mrb[0].mxu0
        %v1055 = vpop.f32.mrb[0].mxu0
        %v1056 = vadd.f32 %v821, %v1055
        %v1057 = vpop.f32.mrb[0].mxu0
        %1058 = vmatprep.mubr.bf16.mxu0 0
        %1059 = vmatmul.mubr.bf16.gmra.mrb[0].mxu0 %v585
        %v1060 = vpop.f32.mrb[0].mxu0
        %v1061 = vadd.f32 %v821, %v1060
        %v1062 = vpop.f32.mrb[0].mxu0
        %v1063 = vpop.f32.mrb[0].mxu0
        %v1064 = vadd.f32 %v821, %v1063
        %v1065 = vpop.f32.mrb[0].mxu0
        %1066 = vmatprep.mubr.bf16.mxu0 0
        %1067 = vmatmul.mubr.bf16.gmra.mrb[0].mxu0 %v588
        %v1068 = vpop.f32.mrb[0].mxu0
        %v1069 = vadd.f32 %v821, %v1068
        %v1070 = vpop.f32.mrb[0].mxu0
        %v1071 = vpop.f32.mrb[0].mxu0
        %v1072 = vadd.f32 %v821, %v1071
        %v1073 = vpop.f32.mrb[0].mxu0
        %1074 = vmatprep.mubr.bf16.mxu0 0
        %1075 = vmatmul.mubr.bf16.gmra.mrb[0].mxu0 %v591
        %v1076 = vpop.f32.mrb[0].mxu0
        %v1077 = vadd.f32 %v821, %v1076
        %v1078 = vpop.f32.mrb[0].mxu0
        %v1079 = vpop.f32.mrb[0].mxu0
        %v1080 = vadd.f32 %v821, %v1079
        %v1081 = vpop.f32.mrb[0].mxu0
        %1082 = vmatprep.mubr.bf16.mxu0 0
        %1083 = vmatmul.mubr.bf16.gmra.mrb[0].mxu0 %v594
        %v1084 = vpop.f32.mrb[0].mxu0
        %v1085 = vadd.f32 %v821, %v1084
        %v1086 = vpop.f32.mrb[0].mxu0
        %v1087 = vpop.f32.mrb[0].mxu0
        %v1088 = vadd.f32 %v821, %v1087
        %v1089 = vpop.f32.mrb[0].mxu0
        %1090 = vmatprep.mubr.bf16.mxu0 0
        %1091 = vmatmul.mubr.bf16.gmra.mrb[0].mxu0 %v597
        %v1092 = vpop.f32.mrb[0].mxu0
        %v1093 = vadd.f32 %v821, %v1092
        %v1094 = vpop.f32.mrb[0].mxu0
        %v1095 = vpop.f32.mrb[0].mxu0
        %v1096 = vadd.f32 %v821, %v1095
        %v1097 = vpop.f32.mrb[0].mxu0
        %1098 = vdwg.mxu0
        %v1099 = vsub.f32 0.0, %v634
        %v1100 = vsub.f32 0.0, %v636
        %v1101 = vsub.f32 0.0, %v747
        %v1102 = vsub.f32 0.0, %v638
        %v1103 = vsub.f32 0.0, %v640
        %v1104 = vsub.f32 0.0, %v750
        %v1105 = vsub.f32 0.0, %v644
        %v1106 = vsub.f32 0.0, %v646
        %v1107 = vsub.f32 0.0, %v755
        %v1108 = vsub.f32 0.0, %v648
        %v1109 = vsub.f32 0.0, %v650
        %v1110 = vsub.f32 0.0, %v758
        %v1111 = vsub.f32 0.0, %v654
        %v1112 = vsub.f32 0.0, %v656
        %v1113 = vsub.f32 0.0, %v763
        %v1114 = vsub.f32 0.0, %v658
        %v1115 = vsub.f32 0.0, %v660
        %v1116 = vsub.f32 0.0, %v766
        %v1117 = vsub.f32 0.0, %v664
        %v1118 = vsub.f32 0.0, %v666
        %v1119 = vsub.f32 0.0, %v771
        %v1120 = vsub.f32 0.0, %v668
        %v1121 = vsub.f32 0.0, %v670
        %v1122 = vsub.f32 0.0, %v774
        %v1123 = vsub.f32 0.0, %v674
        %v1124 = vsub.f32 0.0, %v676
        %v1125 = vsub.f32 0.0, %v779
        %v1126 = vsub.f32 0.0, %v678
        %v1127 = vsub.f32 0.0, %v680
        %v1128 = vsub.f32 0.0, %v782
        %v1129 = vsub.f32 0.0, %v684
        %v1130 = vsub.f32 0.0, %v686
        %v1131 = vsub.f32 0.0, %v787
        %v1132 = vsub.f32 0.0, %v688
        %v1133 = vsub.f32 0.0, %v690
        %v1134 = vsub.f32 0.0, %v790
        %v1135 = vsub.f32 0.0, %v694
        %v1136 = vsub.f32 0.0, %v696
        %v1137 = vsub.f32 0.0, %v795
        %v1138 = vsub.f32 0.0, %v698
        %v1139 = vsub.f32 0.0, %v700
        %v1140 = vsub.f32 0.0, %v798
        %v1141 = vsub.f32 0.0, %v704
        %v1142 = vsub.f32 0.0, %v706
        %v1143 = vsub.f32 0.0, %v803
        %v1144 = vsub.f32 0.0, %v708
        %v1145 = vsub.f32 0.0, %v710
        %v1146 = vsub.f32 0.0, %v806
        %v1147 = vmul.f32 %v1099, 1.442695
        %v1148 = vpow.pop %v1147
        %v1149 = vmul.f32 %v1100, 1.442695
        %v1150 = vpow.pop %v1149
        %v1151 = vmul.f32 %v1101, 1.442695
        %v1152 = vpow.pop %v1151
        %v1153 = vmul.f32 %v1102, 1.442695
        %v1154 = vpow.pop %v1153
        %v1155 = vmul.f32 %v1103, 1.442695
        %v1156 = vpow.pop %v1155
        %v1157 = vmul.f32 %v1104, 1.442695
        %v1158 = vpow.pop %v1157
        %v1159 = vmul.f32 %v1105, 1.442695
        %v1160 = vpow.pop %v1159
        %v1161 = vmul.f32 %v1106, 1.442695
        %v1162 = vpow.pop %v1161
        %v1163 = vmul.f32 %v1107, 1.442695
        %v1164 = vpow.pop %v1163
        %v1165 = vmul.f32 %v1108, 1.442695
        %v1166 = vpow.pop %v1165
        %v1167 = vmul.f32 %v1109, 1.442695
        %v1168 = vpow.pop %v1167
        %v1169 = vmul.f32 %v1110, 1.442695
        %v1170 = vpow.pop %v1169
        %v1171 = vmul.f32 %v1111, 1.442695
        %v1172 = vpow.pop %v1171
        %v1173 = vmul.f32 %v1112, 1.442695
        %v1174 = vpow.pop %v1173
        %v1175 = vmul.f32 %v1113, 1.442695
        %v1176 = vpow.pop %v1175
        %v1177 = vmul.f32 %v1114, 1.442695
        %v1178 = vpow.pop %v1177
        %v1179 = vmul.f32 %v1115, 1.442695
        %v1180 = vpow.pop %v1179
        %v1181 = vmul.f32 %v1116, 1.442695
        %v1182 = vpow.pop %v1181
        %v1183 = vmul.f32 %v1117, 1.442695
        %v1184 = vpow.pop %v1183
        %v1185 = vmul.f32 %v1118, 1.442695
        %v1186 = vpow.pop %v1185
        %v1187 = vmul.f32 %v1119, 1.442695
        %v1188 = vpow.pop %v1187
        %v1189 = vmul.f32 %v1120, 1.442695
        %v1190 = vpow.pop %v1189
        %v1191 = vmul.f32 %v1121, 1.442695
        %v1192 = vpow.pop %v1191
        %v1193 = vmul.f32 %v1122, 1.442695
        %v1194 = vpow.pop %v1193
        %v1195 = vmul.f32 %v1123, 1.442695
        %v1196 = vpow.pop %v1195
        %v1197 = vmul.f32 %v1124, 1.442695
        %v1198 = vpow.pop %v1197
        %v1199 = vmul.f32 %v1125, 1.442695
        %v1200 = vpow.pop %v1199
        %v1201 = vmul.f32 %v1126, 1.442695
        %v1202 = vpow.pop %v1201
        %v1203 = vmul.f32 %v1127, 1.442695
        %v1204 = vpow.pop %v1203
        %v1205 = vmul.f32 %v1128, 1.442695
        %v1206 = vpow.pop %v1205
        %v1207 = vmul.f32 %v1129, 1.442695
        %v1208 = vpow.pop %v1207
        %v1209 = vmul.f32 %v1130, 1.442695
        %v1210 = vpow.pop %v1209
        %v1211 = vmul.f32 %v1131, 1.442695
        %v1212 = vpow.pop %v1211
        %v1213 = vmul.f32 %v1132, 1.442695
        %v1214 = vpow.pop %v1213
        %v1215 = vmul.f32 %v1133, 1.442695
        %v1216 = vpow.pop %v1215
        %v1217 = vmul.f32 %v1134, 1.442695
        %v1218 = vpow.pop %v1217
        %v1219 = vmul.f32 %v1135, 1.442695
        %v1220 = vpow.pop %v1219
        %v1221 = vmul.f32 %v1136, 1.442695
        %v1222 = vpow.pop %v1221
        %v1223 = vmul.f32 %v1137, 1.442695
        %v1224 = vpow.pop %v1223
        %v1225 = vmul.f32 %v1138, 1.442695
        %v1226 = vpow.pop %v1225
        %v1227 = vmul.f32 %v1139, 1.442695
        %v1228 = vpow.pop %v1227
        %v1229 = vmul.f32 %v1140, 1.442695
        %v1230 = vpow.pop %v1229
        %v1231 = vmul.f32 %v1141, 1.442695
        %v1232 = vpow.pop %v1231
        %v1233 = vmul.f32 %v1142, 1.442695
        %v1234 = vpow.pop %v1233
        %v1235 = vmul.f32 %v1143, 1.442695
        %v1236 = vpow.pop %v1235
        %v1237 = vmul.f32 %v1144, 1.442695
        %v1238 = vpow.pop %v1237
        %v1239 = vmul.f32 %v1145, 1.442695
        %v1240 = vpow.pop %v1239
        %v1241 = vmul.f32 %v1146, 1.442695
        %v1242 = vpow.pop %v1241
        %v1243 = vadd.f32 %v1148, 1.0
        %v1244 = vadd.f32 %v1150, 1.0
        %v1245 = vadd.f32 %v1152, 1.0
        %v1246 = vadd.f32 %v1154, 1.0
        %v1247 = vadd.f32 %v1156, 1.0
        %v1248 = vadd.f32 %v1158, 1.0
        %v1249 = vadd.f32 %v1160, 1.0
        %v1250 = vadd.f32 %v1162, 1.0
        %v1251 = vadd.f32 %v1164, 1.0
        %v1252 = vadd.f32 %v1166, 1.0
        %v1253 = vadd.f32 %v1168, 1.0
        %v1254 = vadd.f32 %v1170, 1.0
        %v1255 = vadd.f32 %v1172, 1.0
        %v1256 = vadd.f32 %v1174, 1.0
        %v1257 = vadd.f32 %v1176, 1.0
        %v1258 = vadd.f32 %v1178, 1.0
        %v1259 = vadd.f32 %v1180, 1.0
        %v1260 = vadd.f32 %v1182, 1.0
        %v1261 = vadd.f32 %v1184, 1.0
        %v1262 = vadd.f32 %v1186, 1.0
        %v1263 = vadd.f32 %v1188, 1.0
        %v1264 = vadd.f32 %v1190, 1.0
        %v1265 = vadd.f32 %v1192, 1.0
        %v1266 = vadd.f32 %v1194, 1.0
        %v1267 = vadd.f32 %v1196, 1.0
        %v1268 = vadd.f32 %v1198, 1.0
        %v1269 = vadd.f32 %v1200, 1.0
        %v1270 = vadd.f32 %v1202, 1.0
        %v1271 = vadd.f32 %v1204, 1.0
        %v1272 = vadd.f32 %v1206, 1.0
        %v1273 = vadd.f32 %v1208, 1.0
        %v1274 = vadd.f32 %v1210, 1.0
        %v1275 = vadd.f32 %v1212, 1.0
        %v1276 = vadd.f32 %v1214, 1.0
        %v1277 = vadd.f32 %v1216, 1.0
        %v1278 = vadd.f32 %v1218, 1.0
        %v1279 = vadd.f32 %v1220, 1.0
        %v1280 = vadd.f32 %v1222, 1.0
        %v1281 = vadd.f32 %v1224, 1.0
        %v1282 = vadd.f32 %v1226, 1.0
        %v1283 = vadd.f32 %v1228, 1.0
        %v1284 = vadd.f32 %v1230, 1.0
        %v1285 = vadd.f32 %v1232, 1.0
        %v1286 = vadd.f32 %v1234, 1.0
        %v1287 = vadd.f32 %v1236, 1.0
        %v1288 = vadd.f32 %v1238, 1.0
        %v1289 = vadd.f32 %v1240, 1.0
        %v1290 = vadd.f32 %v1242, 1.0
        %v1291 = vrcp.pop %v1243
        %v1292 = vrcp.pop %v1244
        %v1293 = vrcp.pop %v1245
        %v1294 = vrcp.pop %v1246
        %v1295 = vrcp.pop %v1247
        %v1296 = vrcp.pop %v1248
        %v1297 = vrcp.pop %v1249
        %v1298 = vrcp.pop %v1250
        %v1299 = vrcp.pop %v1251
        %v1300 = vrcp.pop %v1252
        %v1301 = vrcp.pop %v1253
        %v1302 = vrcp.pop %v1254
        %v1303 = vrcp.pop %v1255
        %v1304 = vrcp.pop %v1256
        %v1305 = vrcp.pop %v1257
        %v1306 = vrcp.pop %v1258
        %v1307 = vrcp.pop %v1259
        %v1308 = vrcp.pop %v1260
        %v1309 = vrcp.pop %v1261
        %v1310 = vrcp.pop %v1262
        %v1311 = vrcp.pop %v1263
        %v1312 = vrcp.pop %v1264
        %v1313 = vrcp.pop %v1265
        %v1314 = vrcp.pop %v1266
        %v1315 = vrcp.pop %v1267
        %v1316 = vrcp.pop %v1268
        %v1317 = vrcp.pop %v1269
        %v1318 = vrcp.pop %v1270
        %v1319 = vrcp.pop %v1271
        %v1320 = vrcp.pop %v1272
        %v1321 = vrcp.pop %v1273
        %v1322 = vrcp.pop %v1274
        %v1323 = vrcp.pop %v1275
        %v1324 = vrcp.pop %v1276
        %v1325 = vrcp.pop %v1277
        %v1326 = vrcp.pop %v1278
        %v1327 = vrcp.pop %v1279
        %v1328 = vrcp.pop %v1280
        %v1329 = vrcp.pop %v1281
        %v1330 = vrcp.pop %v1282
        %v1331 = vrcp.pop %v1283
        %v1332 = vrcp.pop %v1284
        %v1333 = vrcp.pop %v1285
        %v1334 = vrcp.pop %v1286
        %v1335 = vrcp.pop %v1287
        %v1336 = vrcp.pop %v1288
        %v1337 = vrcp.pop %v1289
        %v1338 = vrcp.pop %v1290
        %v1339 = vmul.f32 %v1291, %v924
        %v1340 = vmul.f32 %v1292, %v926
        %v1341 = vmul.f32 %v1293, %v1037
        %v1342 = vmul.f32 %v1294, %v928
        %v1343 = vmul.f32 %v1295, %v930
        %v1344 = vmul.f32 %v1296, %v1040
        %v1345 = vmul.f32 %v1297, %v934
        %v1346 = vmul.f32 %v1298, %v936
        %v1347 = vmul.f32 %v1299, %v1045
        %v1348 = vmul.f32 %v1300, %v938
        %v1349 = vmul.f32 %v1301, %v940
        %v1350 = vmul.f32 %v1302, %v1048
        %v1351 = vmul.f32 %v1303, %v944
        %v1352 = vmul.f32 %v1304, %v946
        %v1353 = vmul.f32 %v1305, %v1053
        %v1354 = vmul.f32 %v1306, %v948
        %v1355 = vmul.f32 %v1307, %v950
        %v1356 = vmul.f32 %v1308, %v1056
        %v1357 = vmul.f32 %v1309, %v954
        %v1358 = vmul.f32 %v1310, %v956
        %v1359 = vmul.f32 %v1311, %v1061
        %v1360 = vmul.f32 %v1312, %v958
        %v1361 = vmul.f32 %v1313, %v960
        %v1362 = vmul.f32 %v1314, %v1064
        %v1363 = vmul.f32 %v1315, %v964
        %v1364 = vmul.f32 %v1316, %v966
        %v1365 = vmul.f32 %v1317, %v1069
        %v1366 = vmul.f32 %v1318, %v968
        %v1367 = vmul.f32 %v1319, %v970
        %v1368 = vmul.f32 %v1320, %v1072
        %v1369 = vmul.f32 %v1321, %v974
        %v1370 = vmul.f32 %v1322, %v976
        %v1371 = vmul.f32 %v1323, %v1077
        %v1372 = vmul.f32 %v1324, %v978
        %v1373 = vmul.f32 %v1325, %v980
        %v1374 = vmul.f32 %v1326, %v1080
        %v1375 = vmul.f32 %v1327, %v984
        %v1376 = vmul.f32 %v1328, %v986
        %v1377 = vmul.f32 %v1329, %v1085
        %v1378 = vmul.f32 %v1330, %v988
        %v1379 = vmul.f32 %v1331, %v990
        %v1380 = vmul.f32 %v1332, %v1088
        %v1381 = vmul.f32 %v1333, %v994
        %v1382 = vmul.f32 %v1334, %v996
        %v1383 = vmul.f32 %v1335, %v1093
        %v1384 = vmul.f32 %v1336, %v998
        %v1385 = vmul.f32 %v1337, %v1000
        %v1386 = vmul.f32 %v1338, %v1096
        %v1387 = vadd.f32 %v1339, %v1340
        %v1388 = vadd.f32 %v1342, %v1343
        %v1389 = vadd.f32 %v1345, %v1346
        %v1390 = vadd.f32 %v1348, %v1349
        %v1391 = vadd.f32 %v1351, %v1352
        %v1392 = vadd.f32 %v1354, %v1355
        %v1393 = vadd.f32 %v1357, %v1358
        %v1394 = vadd.f32 %v1360, %v1361
        %v1395 = vadd.f32 %v1363, %v1364
        %v1396 = vadd.f32 %v1366, %v1367
        %v1397 = vadd.f32 %v1369, %v1370
        %v1398 = vadd.f32 %v1372, %v1373
        %v1399 = vadd.f32 %v1375, %v1376
        %v1400 = vadd.f32 %v1378, %v1379
        %v1401 = vadd.f32 %v1381, %v1382
        %v1402 = vadd.f32 %v1384, %v1385
        %v1403 = vadd.f32 %v1387, %v1341
        %v1404 = vadd.f32 %v1388, %v1344
        %v1405 = vadd.f32 %v1389, %v1347
        %v1406 = vadd.f32 %v1390, %v1350
        %v1407 = vadd.f32 %v1391, %v1353
        %v1408 = vadd.f32 %v1392, %v1356
        %v1409 = vadd.f32 %v1393, %v1359
        %v1410 = vadd.f32 %v1394, %v1362
        %v1411 = vadd.f32 %v1395, %v1365
        %v1412 = vadd.f32 %v1396, %v1368
        %v1413 = vadd.f32 %v1397, %v1371
        %v1414 = vadd.f32 %v1398, %v1374
        %v1415 = vadd.f32 %v1399, %v1377
        %v1416 = vadd.f32 %v1400, %v1380
        %v1417 = vadd.f32 %v1401, %v1383
        %v1418 = vadd.f32 %v1402, %v1386
        %1419 = vst [vmem:[%s218] sm:$0xff] %v1403
        %1420 = vst [vmem:[%s218 + $0x8] sm:$0xff] %v1404
        %1421 = vst [vmem:[%s218 + $0x10] sm:$0xff] %v1405
        %1422 = vst [vmem:[%s218 + $0x18] sm:$0xff] %v1406
        %1423 = vst [vmem:[%s218 + $0x20] sm:$0xff] %v1407
        %1424 = vst [vmem:[%s218 + $0x28] sm:$0xff] %v1408
        %1425 = vst [vmem:[%s218 + $0x30] sm:$0xff] %v1409
        %1426 = vst [vmem:[%s218 + $0x38] sm:$0xff] %v1410
        %1427 = vst [vmem:[%s218 + $0x40] sm:$0xff] %v1411
        %1428 = vst [vmem:[%s218 + $0x48] sm:$0xff] %v1412
        %1429 = vst [vmem:[%s218 + $0x50] sm:$0xff] %v1413
        %1430 = vst [vmem:[%s218 + $0x58] sm:$0xff] %v1414
        %1431 = vst [vmem:[%s218 + $0x60] sm:$0xff] %v1415
        %1432 = vst [vmem:[%s218 + $0x68] sm:$0xff] %v1416
        %1433 = vst [vmem:[%s218 + $0x70] sm:$0xff] %v1417
        %1434 = vst [vmem:[%s218 + $0x78] sm:$0xff] %v1418
        %v1435 = vadd.f32 %v1403, %v227
        %v1436 = vadd.f32 %v1404, %v228
        %v1437 = vadd.f32 %v1405, %v229
        %v1438 = vadd.f32 %v1406, %v230
        %v1439 = vadd.f32 %v1407, %v231
        %v1440 = vadd.f32 %v1408, %v232
        %v1441 = vadd.f32 %v1409, %v233
        %v1442 = vadd.f32 %v1410, %v234
        %v1443 = vadd.f32 %v1411, %v235
        %v1444 = vadd.f32 %v1412, %v236
        %v1445 = vadd.f32 %v1413, %v237
        %v1446 = vadd.f32 %v1414, %v238
        %v1447 = vadd.f32 %v1415, %v239
        %v1448 = vadd.f32 %v1416, %v240
        %v1449 = vadd.f32 %v1417, %v241
        %v1450 = vadd.f32 %v1418, %v242
        %vm1451 = vcmask 261120
        %1452 = vst.msk [vmem:[%s218] sm:$0xff] %vm1451, %v1435
        %1453 = vst.msk [vmem:[%s218 + $0x8] sm:$0xff] %vm1451, %v1436
        %1454 = vst.msk [vmem:[%s218 + $0x10] sm:$0xff] %vm1451, %v1437
        %1455 = vst.msk [vmem:[%s218 + $0x18] sm:$0xff] %vm1451, %v1438
        %1456 = vst.msk [vmem:[%s218 + $0x20] sm:$0xff] %vm1451, %v1439
        %1457 = vst.msk [vmem:[%s218 + $0x28] sm:$0xff] %vm1451, %v1440
        %1458 = vst.msk [vmem:[%s218 + $0x30] sm:$0xff] %vm1451, %v1441
        %1459 = vst.msk [vmem:[%s218 + $0x38] sm:$0xff] %vm1451, %v1442
        %1460 = vst.msk [vmem:[%s218 + $0x40] sm:$0xff] %vm1451, %v1443
        %1461 = vst.msk [vmem:[%s218 + $0x48] sm:$0xff] %vm1451, %v1444
        %1462 = vst.msk [vmem:[%s218 + $0x50] sm:$0xff] %vm1451, %v1445
        %1463 = vst.msk [vmem:[%s218 + $0x58] sm:$0xff] %vm1451, %v1446
        %1464 = vst.msk [vmem:[%s218 + $0x60] sm:$0xff] %vm1451, %v1447
        %1465 = vst.msk [vmem:[%s218 + $0x68] sm:$0xff] %vm1451, %v1448
        %1466 = vst.msk [vmem:[%s218 + $0x70] sm:$0xff] %vm1451, %v1449
        %1467 = vst.msk [vmem:[%s218 + $0x78] sm:$0xff] %vm1451, %v1450
        %s1468 = sand.u32 %s137, 1
        %s1469 = scalar_lea.sflag [#allocation3], %s1468
        %s1470 = sand.u32 %s137, 1
        %s1471 = smul.addr %s1470, 128
        %s1472 = scalar_lea.vmem [#allocation2], %s1471
        // Predicated region
        $region41: #{tpu_custom_call.1} parent=39 // pred_check
          %p1473 = pneg %p147
        $region42: #{tpu_custom_call.1} parent=39 // pred_check_branch
          %1475 = sbr.rel (%p1473) target = $region44
        $region43: #{tpu_custom_call.1} parent=39 // pred_region
          %s1476 = smul.u32 16, %s19
          %s1478 = ssub.s32 2048, 2048
          %1479 = vsyncadd %s1469, %s1478
          %s1480 = smul.addr %s1476, 128
          %s1481 = scalar_lea.hbm %s5, %s1480
          %s1482 = sshll.u32 %s1472, 4
          %s1483 = int_to_ptr.vmem [resolvable:$true] %s1482
          %1488 = dma.vmem_to_hbm [thread:$0]  %s1483, 2048, %s1481, %s1469, 128, 128, 8
        $region44: #{tpu_custom_call.1} parent=39 // pred_fallthru
          _
      $region40: #{tpu_custom_call.1} parent=5 // pred_fallthru
        _
      %p1489 = scmp.le.s32.totalorder 2, %s14
      // Predicated region
      $region45: #{tpu_custom_call.1} parent=5 // pred_check
        %p1490 = pneg %p1489
      $region46: #{tpu_custom_call.1} parent=5 // pred_check_branch
        %1492 = sbr.rel (%p1490) target = $region48
      $region47: #{tpu_custom_call.1} parent=5 // pred_region
        %s1493 = ssub.s32 %s14, 2
        // Predicated region
        $region49: #{tpu_custom_call.1} parent=47 // pred_check
          %p1494 = pneg %p153
        $region50: #{tpu_custom_call.1} parent=47 // pred_check_branch
          %1496 = sbr.rel (%p1494) target = $region52
        $region51: #{tpu_custom_call.1} parent=47 // pred_region
          %s1497 = sand.u32 %s138, 1
          %s1498 = scalar_lea.sflag [#allocation3], %s1497
          %s1499 = sand.u32 %s138, 1
          %s1500 = smul.addr %s1499, 128
          %s1501 = scalar_lea.vmem [#allocation2], %s1500
          %1502 = dma.done %s1498, 2048
        $region52: #{tpu_custom_call.1} parent=47 // pred_fallthru
          _
      $region48: #{tpu_custom_call.1} parent=5 // pred_fallthru
        _
    $region6: #{tpu_custom_call.1} parent=1 // loop_footer
      %s18 = sadd.s32 1, %s14
    $region7: #{tpu_custom_call.1} parent=1 // loop_footer_branch
      %13 = sbr.rel target = $region3
    $region8: #{tpu_custom_call.1} parent=1 // loop_exit
      _
    %1503 = vsyncpa [#allocation3], 1
    %s1504 = scalar_lea.sflag [#allocation3], 1
    %1505 = vsyncpa %s1504, 1

// kernel: tpu_custom_call.1
$region0: #{tpu_custom_call.1}
  #allocation0 [shape = 'u32[]', space=smem, size = 0x4, offset = 0x4, fixed_abs, tag = 'smem constant byte address 0x4 - core index']
  #allocation1 [shape = 'u32[144,128]{1,0:T(1,128)}', space=vmem, size = 0x12000, scoped, tag = 'internal scratch']
  %s0 = inlined_call_operand.vmem [shape: f32[256,64], index: 0, kind: input, shape index: {}]
  %s1 = inlined_call_operand.vmem [shape: bf16[64,384], index: 1, kind: input, shape index: {}]
  %s2 = inlined_call_operand.vmem [shape: f32[1,384], index: 2, kind: input, shape index: {}]
  %s3 = inlined_call_operand.vmem [shape: bf16[64,384], index: 3, kind: input, shape index: {}]
  %s4 = inlined_call_operand.vmem [shape: f32[1,384], index: 4, kind: input, shape index: {}]
  %s5 = inlined_call_operand.hbm [shape: f32[256,128], index: 5, kind: output, shape index: {}]
  %s6 = sld [smem:[#allocation0]]
  $region53: #{tpu_custom_call.1} parent=0
    _
  %s8 = ssub.s32 1, %s6
  %s9 = scalar_select 0, %s8, %s6
  $region1: #{tpu_custom_call.1} parent=0
    #allocation2 [shape = 'u8[131072]{0}', space=vmem, size = 0x20000, scoped, tag = 'output window, operand 0']
    #allocation3 [shape = 's32[2]{0}', space=sflag, size = 0x8, scoped, tag = 'scoped memory for tpu_custom_call.1']
    %10 = vsyncpa [#allocation3], 0
    %s11 = scalar_lea.sflag [#allocation3], 1
    %12 = vsyncpa %s11, 0
    loop: start=0, step=1, limit=4
    $region2: #{tpu_custom_call.1} parent=1 // loop_pre_header
      _
    $region3: #{tpu_custom_call.1} parent=1 // loop_header
      %s14 = sphi 0, %s18
      %p15 = scmp.ge.s32.totalorder %s14, 4
      %s24 = sphi 0, %s26
      %s27 = sphi 0, %s24
      %s28 = sphi 0, %s27
      %s44 = sphi 0, %s28
      %s48 = sphi 0, %s48
      %s50 = sphi 0, %s48
      %s51 = sphi 0, %s50
      %s65 = sphi 0, %s51
      %s69 = sphi 0, %s69
      %s71 = sphi 0, %s69
      %s72 = sphi 0, %s71
      %s86 = sphi 0, %s72
      %s90 = sphi 0, %s90
      %s92 = sphi 0, %s90
      %s93 = sphi 0, %s92
      %s107 = sphi 0, %s93
      %s111 = sphi 0, %s111
      %s113 = sphi 0, %s111
      %s114 = sphi 0, %s113
      %s128 = sphi 0, %s114
      %s134 = sphi 0, %s136
      %s137 = sphi 0, %s134
      %s138 = sphi 0, %s137
      %s154 = sphi 0, %s138
    $region4: #{tpu_custom_call.1} parent=1 // loop_header_branch
      %17 = sbr.rel (%p15) target = $region8
    $region5: #{tpu_custom_call.1} parent=1 // loop_body
      %s19 = ssub.s32 %s14, 1
      %s20 = ssub.s32 %s14, 2
      %s21 = sadd.s32 %s14, 1
      %s22 = ssub.s32 %s14, %s21
      %p23 = scmp.eq.s32.totalorder %s22, 0
      %s25 = sadd.s32 %s24, 1
      %s26 = scalar_select %p23, %s24, %s25
      %p29 = pneg %p23
      %p30 = scmp.eq.s32.totalorder %s14, 1
      %p31 = por %p29, %p30
      %p32 = scmp.ne.s32.totalorder %s24, %s27
      %p33 = scmp.eq.s32.totalorder %s14, 0
      %p34 = por %p32, %p33
      %p35 = scmp.ne.s32.totalorder %s24, %s27
      %p36 = scmp.eq.s32.totalorder %s19, 1
      %p37 = por %p35, %p36
      %p38 = scmp.ne.s32.totalorder %s27, %s28
      %p39 = scmp.eq.s32.totalorder %s19, 0
      %p40 = por %p38, %p39
      %p41 = scmp.ne.s32.totalorder %s27, %s28
      %p42 = scmp.eq.s32.totalorder %s20, 1
      %p43 = por %p41, %p42
      %p45 = scmp.ne.s32.totalorder %s28, %s44
      %p46 = scmp.eq.s32.totalorder %s20, 0
      %p47 = por %p45, %p46
      %s49 = sadd.s32 %s48, 1
      %p52 = scmp.eq.s32.totalorder %s14, 1
      %p53 = scmp.ne.s32.totalorder %s48, %s50
      %p54 = scmp.eq.s32.totalorder %s14, 0
      %p55 = por %p53, %p54
      %p56 = scmp.ne.s32.totalorder %s48, %s50
      %p57 = scmp.eq.s32.totalorder %s19, 1
      %p58 = por %p56, %p57
      %p59 = scmp.ne.s32.totalorder %s50, %s51
      %p60 = scmp.eq.s32.totalorder %s19, 0
      %p61 = por %p59, %p60
      %p62 = scmp.ne.s32.totalorder %s50, %s51
      %p63 = scmp.eq.s32.totalorder %s20, 1
      %p64 = por %p62, %p63
      %p66 = scmp.ne.s32.totalorder %s51, %s65
      %p67 = scmp.eq.s32.totalorder %s20, 0
      %p68 = por %p66, %p67
      %s70 = sadd.s32 %s69, 1
      %p73 = scmp.eq.s32.totalorder %s14, 1
      %p74 = scmp.ne.s32.totalorder %s69, %s71
      %p75 = scmp.eq.s32.totalorder %s14, 0
      %p76 = por %p74, %p75
      %p77 = scmp.ne.s32.totalorder %s69, %s71
      %p78 = scmp.eq.s32.totalorder %s19, 1
      %p79 = por %p77, %p78
      %p80 = scmp.ne.s32.totalorder %s71, %s72
      %p81 = scmp.eq.s32.totalorder %s19, 0
      %p82 = por %p80, %p81
      %p83 = scmp.ne.s32.totalorder %s71, %s72
      %p84 = scmp.eq.s32.totalorder %s20, 1
      %p85 = por %p83, %p84
      %p87 = scmp.ne.s32.totalorder %s72, %s86
      %p88 = scmp.eq.s32.totalorder %s20, 0
      %p89 = por %p87, %p88
      %s91 = sadd.s32 %s90, 1
      %p94 = scmp.eq.s32.totalorder %s14, 1
      %p95 = scmp.ne.s32.totalorder %s90, %s92
      %p96 = scmp.eq.s32.totalorder %s14, 0
      %p97 = por %p95, %p96
      %p98 = scmp.ne.s32.totalorder %s90, %s92
      %p99 = scmp.eq.s32.totalorder %s19, 1
      %p100 = por %p98, %p99
      %p101 = scmp.ne.s32.totalorder %s92, %s93
      %p102 = scmp.eq.s32.totalorder %s19, 0
      %p103 = por %p101, %p102
      %p104 = scmp.ne.s32.totalorder %s92, %s93
      %p105 = scmp.eq.s32.totalorder %s20, 1
      %p106 = por %p104, %p105
      %p108 = scmp.ne.s32.totalorder %s93, %s107
      %p109 = scmp.eq.s32.totalorder %s20, 0
      %p110 = por %p108, %p109
      %s112 = sadd.s32 %s111, 1
      %p115 = scmp.eq.s32.totalorder %s14, 1
      %p116 = scmp.ne.s32.totalorder %s111, %s113
      %p117 = scmp.eq.s32.totalorder %s14, 0
      %p118 = por %p116, %p117
      %p119 = scmp.ne.s32.totalorder %s111, %s113
      %p120 = scmp.eq.s32.totalorder %s19, 1
      %p121 = por %p119, %p120
      %p122 = scmp.ne.s32.totalorder %s113, %s114
      %p123 = scmp.eq.s32.totalorder %s19, 0
      %p124 = por %p122, %p123
      %p125 = scmp.ne.s32.totalorder %s113, %s114
      %p126 = scmp.eq.s32.totalorder %s20, 1
      %p127 = por %p125, %p126
      %p129 = scmp.ne.s32.totalorder %s114, %s128
      %p130 = scmp.eq.s32.totalorder %s20, 0
      %p131 = por %p129, %p130
      %s132 = ssub.s32 %s14, %s21
      %p133 = scmp.eq.s32.totalorder %s132, 0
      %s135 = sadd.s32 %s134, 1
      %s136 = scalar_select %p133, %s134, %s135
      %p139 = pneg %p133
      %p140 = scmp.eq.s32.totalorder %s14, 1
      %p141 = por %p139, %p140
      %p142 = scmp.ne.s32.totalorder %s134, %s137
      %p143 = scmp.eq.s32.totalorder %s14, 0
      %p144 = por %p142, %p143
      %p145 = scmp.ne.s32.totalorder %s134, %s137
      %p146 = scmp.eq.s32.totalorder %s19, 1
      %p147 = por %p145, %p146
      %p148 = scmp.ne.s32.totalorder %s137, %s138
      %p149 = scmp.eq.s32.totalorder %s19, 0
      %p150 = por %p148, %p149
      %p151 = scmp.ne.s32.totalorder %s137, %s138
      %p152 = scmp.eq.s32.totalorder %s20, 1
      %p153 = por %p151, %p152
      %p155 = scmp.ne.s32.totalorder %s138, %s154
      %p156 = scmp.eq.s32.totalorder %s20, 0
      %p157 = por %p155, %p156
      %p158 = scmp.le.s32.totalorder 1, %s14
      %p159 = scmp.lt.s32.totalorder %s14, 3
      %p160 = pnand %p158, %p159
      %p161 = pneg %p160
      // Predicated region
      $region9: #{tpu_custom_call.1} parent=5 // pred_check
        _
      $region10: #{tpu_custom_call.1} parent=5 // pred_check_branch
        %163 = sbr.rel (%p160) target = $region12
      $region11: #{tpu_custom_call.1} parent=5 // pred_region
        %s164 = ssub.s32 %s14, 1
        // Predicated region
        $region13: #{tpu_custom_call.1} parent=11 // pred_check
          %p165 = pneg %p61
        $region14: #{tpu_custom_call.1} parent=11 // pred_check_branch
          %167 = sbr.rel (%p165) target = $region16
        $region15: #{tpu_custom_call.1} parent=11 // pred_region
          _
        $region16: #{tpu_custom_call.1} parent=11 // pred_fallthru
          _
        // Predicated region
        $region17: #{tpu_custom_call.1} parent=11 // pred_check
          %p168 = pneg %p82
        $region18: #{tpu_custom_call.1} parent=11 // pred_check_branch
          %170 = sbr.rel (%p168) target = $region20
        $region19: #{tpu_custom_call.1} parent=11 // pred_region
          _
        $region20: #{tpu_custom_call.1} parent=11 // pred_fallthru
          _
        // Predicated region
        $region21: #{tpu_custom_call.1} parent=11 // pred_check
          %p171 = pneg %p103
        $region22: #{tpu_custom_call.1} parent=11 // pred_check_branch
          %173 = sbr.rel (%p171) target = $region24
        $region23: #{tpu_custom_call.1} parent=11 // pred_region
          _
        $region24: #{tpu_custom_call.1} parent=11 // pred_fallthru
          _
        // Predicated region
        $region25: #{tpu_custom_call.1} parent=11 // pred_check
          %p174 = pneg %p124
        $region26: #{tpu_custom_call.1} parent=11 // pred_check_branch
          %176 = sbr.rel (%p174) target = $region28
        $region27: #{tpu_custom_call.1} parent=11 // pred_region
          _
        $region28: #{tpu_custom_call.1} parent=11 // pred_fallthru
          _
      $region12: #{tpu_custom_call.1} parent=5 // pred_fallthru
        _
      %p177 = scmp.lt.s32.totalorder %s14, 2
      // Predicated region
      $region29: #{tpu_custom_call.1} parent=5 // pred_check
        %p178 = pneg %p177
      $region30: #{tpu_custom_call.1} parent=5 // pred_check_branch
        %180 = sbr.rel (%p178) target = $region32
      $region31: #{tpu_custom_call.1} parent=5 // pred_region
        // Predicated region
        $region33: #{tpu_custom_call.1} parent=31 // pred_check
          %p181 = pneg %p34
        $region34: #{tpu_custom_call.1} parent=31 // pred_check_branch
          %183 = sbr.rel (%p181) target = $region36
        $region35: #{tpu_custom_call.1} parent=31 // pred_region
          %s184 = smul.u32 16, %s14
          %p185 = scmp.lt.s32.totalorder %s184, 31
          %s186 = scalar_select %p185, %s184, 31
          %s187 = smul.addr %s186, 8
          %s188 = scalar_lea.vmem %s0, %s187
          %s189 = smul.u32 16, %s14
        $region36: #{tpu_custom_call.1} parent=31 // pred_fallthru
          _
      $region32: #{tpu_custom_call.1} parent=5 // pred_fallthru
        _
      %p190 = scmp.le.s32.totalorder 1, %s14
      %p191 = scmp.lt.s32.totalorder %s14, 3
      %p192 = pnand %p190, %p191
      %p193 = pneg %p192
      // Predicated region
      $region37: #{tpu_custom_call.1} parent=5 // pred_check
        _
      $region38: #{tpu_custom_call.1} parent=5 // pred_check_branch
        %195 = sbr.rel (%p192) target = $region40
      $region39: #{tpu_custom_call.1} parent=5 // pred_region
        %s196 = ssub.s32 %s14, 1
        %s197 = smul.u32 16, %s19
        %p198 = scmp.lt.s32.totalorder %s197, 31
        %s199 = scalar_select %p198, %s197, 31
        %s200 = smul.addr %s199, 8
        %s201 = scalar_lea.vmem %s0, %s200
        %p202 = pneg %p40
        %p203 = pneg %p37
        %p204 = pneg %p61
        %p205 = pneg %p58
        %p206 = pneg %p82
        %p207 = pneg %p79
        %p208 = pneg %p103
        %p209 = pneg %p100
        %p210 = pneg %p124
        %p211 = pneg %p121
        %p212 = pneg %p150
        %p213 = pneg %p147
        %s214 = sand.u32 %s137, 1
        %s215 = scalar_lea.sflag [#allocation3], %s214
        %s216 = sand.u32 %s137, 1
        %s217 = smul.addr %s216, 128
        %s218 = scalar_lea.vmem [#allocation2], %s217
        %s219 = smul.u32 16, %s19
        %p220 = scmp.lt.s32.totalorder %s219, 31
        %s221 = scalar_select %p220, %s219, 31
        %s222 = smul.addr %s221, 8
        %s223 = scalar_lea.vmem %s0, %s222
        %s224 = smul.u32 16, %s19
        %s225 = smul.u32 16, %s19
        %v227 = vld [vmem:[%s223] sm:$0xff]
        %v228 = vld [vmem:[%s223 + $0x8] sm:$0xff]
        %v229 = vld [vmem:[%s223 + $0x10] sm:$0xff]
        %v230 = vld [vmem:[%s223 + $0x18] sm:$0xff]
        %v231 = vld [vmem:[%s223 + $0x20] sm:$0xff]
        %v232 = vld [vmem:[%s223 + $0x28] sm:$0xff]
        %v233 = vld [vmem:[%s223 + $0x30] sm:$0xff]
        %v234 = vld [vmem:[%s223 + $0x38] sm:$0xff]
        %v235 = vld [vmem:[%s223 + $0x40] sm:$0xff]
        %v236 = vld [vmem:[%s223 + $0x48] sm:$0xff]
        %v237 = vld [vmem:[%s223 + $0x50] sm:$0xff]
        %v238 = vld [vmem:[%s223 + $0x58] sm:$0xff]
        %v239 = vld [vmem:[%s223 + $0x60] sm:$0xff]
        %v240 = vld [vmem:[%s223 + $0x68] sm:$0xff]
        %v241 = vld [vmem:[%s223 + $0x70] sm:$0xff]
        %v242 = vld [vmem:[%s223 + $0x78] sm:$0xff]
        %vm243 = vcmask 523264
        %v244 = vsel %vm243, %v227, 0.0
        %245 = vadd.xlane.f32.xlu0 %v244
        %v246 = vpop.xlane.xlu0 %245
        %v247 = vsel %vm243, %v228, 0.0
        %248 = vadd.xlane.f32.xlu0 %v247
        %v249 = vpop.xlane.xlu0 %248
        %v250 = vsel %vm243, %v229, 0.0
        %251 = vadd.xlane.f32.xlu0 %v250
        %v252 = vpop.xlane.xlu0 %251
        %v253 = vsel %vm243, %v230, 0.0
        %254 = vadd.xlane.f32.xlu0 %v253
        %v255 = vpop.xlane.xlu0 %254
        %v256 = vsel %vm243, %v231, 0.0
        %257 = vadd.xlane.f32.xlu0 %v256
        %v258 = vpop.xlane.xlu0 %257
        %v259 = vsel %vm243, %v232, 0.0
        %260 = vadd.xlane.f32.xlu0 %v259
        %v261 = vpop.xlane.xlu0 %260
        %v262 = vsel %vm243, %v233, 0.0
        %263 = vadd.xlane.f32.xlu0 %v262
        %v264 = vpop.xlane.xlu0 %263
        %v265 = vsel %vm243, %v234, 0.0
        %266 = vadd.xlane.f32.xlu0 %v265
        %v267 = vpop.xlane.xlu0 %266
        %v268 = vsel %vm243, %v235, 0.0
        %269 = vadd.xlane.f32.xlu0 %v268
        %v270 = vpop.xlane.xlu0 %269
        %v271 = vsel %vm243, %v236, 0.0
        %272 = vadd.xlane.f32.xlu0 %v271
        %v273 = vpop.xlane.xlu0 %272
        %v274 = vsel %vm243, %v237, 0.0
        %275 = vadd.xlane.f32.xlu0 %v274
        %v276 = vpop.xlane.xlu0 %275
        %v277 = vsel %vm243, %v238, 0.0
        %278 = vadd.xlane.f32.xlu0 %v277
        %v279 = vpop.xlane.xlu0 %278
        %v280 = vsel %vm243, %v239, 0.0
        %281 = vadd.xlane.f32.xlu0 %v280
        %v282 = vpop.xlane.xlu0 %281
        %v283 = vsel %vm243, %v240, 0.0
        %284 = vadd.xlane.f32.xlu0 %v283
        %v285 = vpop.xlane.xlu0 %284
        %v286 = vsel %vm243, %v241, 0.0
        %287 = vadd.xlane.f32.xlu0 %v286
        %v288 = vpop.xlane.xlu0 %287
        %v289 = vsel %vm243, %v242, 0.0
        %290 = vadd.xlane.f32.xlu0 %v289
        %v291 = vpop.xlane.xlu0 %290
        %v292 = vrcp.pop 64.0
        %v293 = vmul.f32 %v246, %v292
        %v294 = vmul.f32 %v249, %v292
        %v295 = vmul.f32 %v252, %v292
        %v296 = vmul.f32 %v255, %v292
        %v297 = vmul.f32 %v258, %v292
        %v298 = vmul.f32 %v261, %v292
        %v299 = vmul.f32 %v264, %v292
        %v300 = vmul.f32 %v267, %v292
        %v301 = vmul.f32 %v270, %v292
        %v302 = vmul.f32 %v273, %v292
        %v303 = vmul.f32 %v276, %v292
        %v304 = vmul.f32 %v279, %v292
        %v305 = vmul.f32 %v282, %v292
        %v306 = vmul.f32 %v285, %v292
        %v307 = vmul.f32 %v288, %v292
        %v308 = vmul.f32 %v291, %v292
        %v309 = vsub.f32 %v227, %v293
        %v310 = vsub.f32 %v228, %v294
        %v311 = vsub.f32 %v229, %v295
        %v312 = vsub.f32 %v230, %v296
        %v313 = vsub.f32 %v231, %v297
        %v314 = vsub.f32 %v232, %v298
        %v315 = vsub.f32 %v233, %v299
        %v316 = vsub.f32 %v234, %v300
        %v317 = vsub.f32 %v235, %v301
        %v318 = vsub.f32 %v236, %v302
        %v319 = vsub.f32 %v237, %v303
        %v320 = vsub.f32 %v238, %v304
        %v321 = vsub.f32 %v239, %v305
        %v322 = vsub.f32 %v240, %v306
        %v323 = vsub.f32 %v241, %v307
        %v324 = vsub.f32 %v242, %v308
        %v325 = vmul.f32 %v309, %v309
        %v326 = vmul.f32 %v310, %v310
        %v327 = vmul.f32 %v311, %v311
        %v328 = vmul.f32 %v312, %v312
        %v329 = vmul.f32 %v313, %v313
        %v330 = vmul.f32 %v314, %v314
        %v331 = vmul.f32 %v315, %v315
        %v332 = vmul.f32 %v316, %v316
        %v333 = vmul.f32 %v317, %v317
        %v334 = vmul.f32 %v318, %v318
        %v335 = vmul.f32 %v319, %v319
        %v336 = vmul.f32 %v320, %v320
        %v337 = vmul.f32 %v321, %v321
        %v338 = vmul.f32 %v322, %v322
        %v339 = vmul.f32 %v323, %v323
        %v340 = vmul.f32 %v324, %v324
        %v341 = vsel %vm243, %v325, 0.0
        %342 = vadd.xlane.f32.xlu0 %v341
        %v343 = vpop.xlane.xlu0 %342
        %v344 = vsel %vm243, %v326, 0.0
        %345 = vadd.xlane.f32.xlu0 %v344
        %v346 = vpop.xlane.xlu0 %345
        %v347 = vsel %vm243, %v327, 0.0
        %348 = vadd.xlane.f32.xlu0 %v347
        %v349 = vpop.xlane.xlu0 %348
        %v350 = vsel %vm243, %v328, 0.0
        %351 = vadd.xlane.f32.xlu0 %v350
        %v352 = vpop.xlane.xlu0 %351
        %v353 = vsel %vm243, %v329, 0.0
        %354 = vadd.xlane.f32.xlu0 %v353
        %v355 = vpop.xlane.xlu0 %354
        %v356 = vsel %vm243, %v330, 0.0
        %357 = vadd.xlane.f32.xlu0 %v356
        %v358 = vpop.xlane.xlu0 %357
        %v359 = vsel %vm243, %v331, 0.0
        %360 = vadd.xlane.f32.xlu0 %v359
        %v361 = vpop.xlane.xlu0 %360
        %v362 = vsel %vm243, %v332, 0.0
        %363 = vadd.xlane.f32.xlu0 %v362
        %v364 = vpop.xlane.xlu0 %363
        %v365 = vsel %vm243, %v333, 0.0
        %366 = vadd.xlane.f32.xlu0 %v365
        %v367 = vpop.xlane.xlu0 %366
        %v368 = vsel %vm243, %v334, 0.0
        %369 = vadd.xlane.f32.xlu0 %v368
        %v370 = vpop.xlane.xlu0 %369
        %v371 = vsel %vm243, %v335, 0.0
        %372 = vadd.xlane.f32.xlu0 %v371
        %v373 = vpop.xlane.xlu0 %372
        %v374 = vsel %vm243, %v336, 0.0
        %375 = vadd.xlane.f32.xlu0 %v374
        %v376 = vpop.xlane.xlu0 %375
        %v377 = vsel %vm243, %v337, 0.0
        %378 = vadd.xlane.f32.xlu0 %v377
        %v379 = vpop.xlane.xlu0 %378
        %v380 = vsel %vm243, %v338, 0.0
        %381 = vadd.xlane.f32.xlu0 %v380
        %v382 = vpop.xlane.xlu0 %381
        %v383 = vsel %vm243, %v339, 0.0
        %384 = vadd.xlane.f32.xlu0 %v383
        %v385 = vpop.xlane.xlu0 %384
        %v386 = vsel %vm243, %v340, 0.0
        %387 = vadd.xlane.f32.xlu0 %v386
        %v388 = vpop.xlane.xlu0 %387
        %v389 = vmul.f32 %v343, %v292
        %v390 = vmul.f32 %v346, %v292
        %v391 = vmul.f32 %v349, %v292
        %v392 = vmul.f32 %v352, %v292
        %v393 = vmul.f32 %v355, %v292
        %v394 = vmul.f32 %v358, %v292
        %v395 = vmul.f32 %v361, %v292
        %v396 = vmul.f32 %v364, %v292
        %v397 = vmul.f32 %v367, %v292
        %v398 = vmul.f32 %v370, %v292
        %v399 = vmul.f32 %v373, %v292
        %v400 = vmul.f32 %v376, %v292
        %v401 = vmul.f32 %v379, %v292
        %v402 = vmul.f32 %v382, %v292
        %v403 = vmul.f32 %v385, %v292
        %v404 = vmul.f32 %v388, %v292
        %v405 = vadd.f32 %v389, 1e-05
        %v406 = vadd.f32 %v390, 1e-05
        %v407 = vadd.f32 %v391, 1e-05
        %v408 = vadd.f32 %v392, 1e-05
        %v409 = vadd.f32 %v393, 1e-05
        %v410 = vadd.f32 %v394, 1e-05
        %v411 = vadd.f32 %v395, 1e-05
        %v412 = vadd.f32 %v396, 1e-05
        %v413 = vadd.f32 %v397, 1e-05
        %v414 = vadd.f32 %v398, 1e-05
        %v415 = vadd.f32 %v399, 1e-05
        %v416 = vadd.f32 %v400, 1e-05
        %v417 = vadd.f32 %v401, 1e-05
        %v418 = vadd.f32 %v402, 1e-05
        %v419 = vadd.f32 %v403, 1e-05
        %v420 = vadd.f32 %v404, 1e-05
        %v421 = vrsqrt.pop %v405
        %v422 = vrsqrt.pop %v406
        %v423 = vrsqrt.pop %v407
        %v424 = vrsqrt.pop %v408
        %v425 = vrsqrt.pop %v409
        %v426 = vrsqrt.pop %v410
        %v427 = vrsqrt.pop %v411
        %v428 = vrsqrt.pop %v412
        %v429 = vrsqrt.pop %v413
        %v430 = vrsqrt.pop %v414
        %v431 = vrsqrt.pop %v415
        %v432 = vrsqrt.pop %v416
        %v433 = vrsqrt.pop %v417
        %v434 = vrsqrt.pop %v418
        %v435 = vrsqrt.pop %v419
        %v436 = vrsqrt.pop %v420
        %v437 = vmul.f32 %v309, %v421
        %v438 = vmul.f32 %v310, %v422
        %v439 = vmul.f32 %v311, %v423
        %v440 = vmul.f32 %v312, %v424
        %v441 = vmul.f32 %v313, %v425
        %v442 = vmul.f32 %v314, %v426
        %v443 = vmul.f32 %v315, %v427
        %v444 = vmul.f32 %v316, %v428
        %v445 = vmul.f32 %v317, %v429
        %v446 = vmul.f32 %v318, %v430
        %v447 = vmul.f32 %v319, %v431
        %v448 = vmul.f32 %v320, %v432
        %v449 = vmul.f32 %v321, %v433
        %v450 = vmul.f32 %v322, %v434
        %v451 = vmul.f32 %v323, %v435
        %v452 = vmul.f32 %v324, %v436
        %v453 = vpack.c.bf16 %v438, %v437
        %v454 = vpack.c.bf16 %v440, %v439
        %v455 = vpack.c.bf16 %v442, %v441
        %v456 = vpack.c.bf16 %v444, %v443
        %v457 = vpack.c.bf16 %v446, %v445
        %v458 = vpack.c.bf16 %v448, %v447
        %v459 = vpack.c.bf16 %v450, %v449
        %v460 = vpack.c.bf16 %v452, %v451
        %v461 = vld [vmem:[%s1] sm:$0xff]
        %v462 = vld [vmem:[%s1 + $0x8] sm:$0xf]
        %v463 = vld [vmem:[%s1 + $0xc] sm:$0xff]
        %v464 = vld [vmem:[%s1 + $0x14] sm:$0xf]
        %v465 = vld [vmem:[%s1 + $0x18] sm:$0xff]
        %v466 = vld [vmem:[%s1 + $0x20] sm:$0xf]
        %v467 = vld [vmem:[%s1 + $0x24] sm:$0xff]
        %v468 = vld [vmem:[%s1 + $0x2c] sm:$0xf]
        %v469 = vld [vmem:[%s1 + $0x30] sm:$0xff]
        %v470 = vld [vmem:[%s1 + $0x38] sm:$0xf]
        %v471 = vld [vmem:[%s1 + $0x3c] sm:$0xff]
        %v472 = vld [vmem:[%s1 + $0x44] sm:$0xf]
        %v473 = vld [vmem:[%s1 + $0x48] sm:$0xff]
        %v474 = vld [vmem:[%s1 + $0x50] sm:$0xf]
        %v475 = vld [vmem:[%s1 + $0x54] sm:$0xff]
        %v476 = vld [vmem:[%s1 + $0x5c] sm:$0xf]
        %v477 = vld [vmem:[%s2] sm:$0x7]
        %v478 = vld [vmem:[%s3] sm:$0xff]
        %v479 = vld [vmem:[%s3 + $0x8] sm:$0xf]
        %v480 = vld [vmem:[%s3 + $0xc] sm:$0xff]
        %v481 = vld [vmem:[%s3 + $0x14] sm:$0xf]
        %v482 = vld [vmem:[%s3 + $0x18] sm:$0xff]
        %v483 = vld [vmem:[%s3 + $0x20] sm:$0xf]
        %v484 = vld [vmem:[%s3 + $0x24] sm:$0xff]
        %v485 = vld [vmem:[%s3 + $0x2c] sm:$0xf]
        %v486 = vld [vmem:[%s3 + $0x30] sm:$0xff]
        %v487 = vld [vmem:[%s3 + $0x38] sm:$0xf]
        %v488 = vld [vmem:[%s3 + $0x3c] sm:$0xff]
        %v489 = vld [vmem:[%s3 + $0x44] sm:$0xf]
        %v490 = vld [vmem:[%s3 + $0x48] sm:$0xff]
        %v491 = vld [vmem:[%s3 + $0x50] sm:$0xf]
        %v492 = vld [vmem:[%s3 + $0x54] sm:$0xff]
        %v493 = vld [vmem:[%s3 + $0x5c] sm:$0xf]
        %v494 = vld [vmem:[%s4] sm:$0x7]
        %v496 = vlaneseq
        %v497 = vshrl.u32 %v496, 7
        %v498 = vsub.s32 0, %v497
        %v499 = vrot.slane %v477, %v498
        %v500 = vlaneseq
        %v501 = vshrl.u32 %v500, 7
        %v502 = vsub.s32 1, %v501
        %v503 = vrot.slane %v477, %v502
        %v504 = vlaneseq
        %v505 = vshrl.u32 %v504, 7
        %v506 = vsub.s32 2, %v505
        %v507 = vrot.slane %v477, %v506
        %v527 = vunpack.c.l.b16 %v461
        %v528 = vunpack.c.h.b16 %v461
        %v529 = vunpack.c.l.b16 %v462
        %v530 = vunpack.c.l.b16 %v463
        %v531 = vunpack.c.h.b16 %v463
        %v532 = vunpack.c.l.b16 %v464
        %v533 = vunpack.c.l.b16 %v465
        %v534 = vunpack.c.h.b16 %v465
        %v535 = vunpack.c.l.b16 %v466
        %v536 = vunpack.c.l.b16 %v467
        %v537 = vunpack.c.h.b16 %v467
        %v538 = vunpack.c.l.b16 %v468
        %v539 = vunpack.c.l.b16 %v469
        %v540 = vunpack.c.h.b16 %v469
        %v541 = vunpack.c.l.b16 %v470
        %v542 = vunpack.c.l.b16 %v471
        %v543 = vunpack.c.h.b16 %v471
        %v544 = vunpack.c.l.b16 %v472
        %v545 = vunpack.c.l.b16 %v473
        %v546 = vunpack.c.h.b16 %v473
        %v547 = vunpack.c.l.b16 %v474
        %v548 = vunpack.c.l.b16 %v475
        %v549 = vunpack.c.h.b16 %v475
        %v550 = vunpack.c.l.b16 %v476
        %v551 = vpack.c.b16 %v530, %v527
        %v552 = vpack.c.b16 %v531, %v528
        %v553 = vpack.c.b16 %v532, %v529
        %v554 = vpack.c.b16 %v536, %v533
        %v555 = vpack.c.b16 %v537, %v534
        %v556 = vpack.c.b16 %v538, %v535
        %v557 = vpack.c.b16 %v542, %v539
        %v558 = vpack.c.b16 %v543, %v540
        %v559 = vpack.c.b16 %v544, %v541
        %v560 = vpack.c.b16 %v548, %v545
        %v561 = vpack.c.b16 %v549, %v546
        %v562 = vpack.c.b16 %v550, %v547
        %v576 = vsel %vm243, %v453, 0
        %v579 = vsel %vm243, %v454, 0
        %v582 = vsel %vm243, %v455, 0
        %v585 = vsel %vm243, %v456, 0
        %v588 = vsel %vm243, %v457, 0
        %v591 = vsel %vm243, %v458, 0
        %v594 = vsel %vm243, %v459, 0
        %v597 = vsel %vm243, %v460, 0
        %599 = vmatprep.subr.bf16.mxu0 %v552
        %600 = vmatpush1.bf16.msra.mxu0 %v551
        %601 = vmatprep.subr.bf16.mxu0 %v555
        %602 = vmatpush1.bf16.msra.mxu0 %v554
        %603 = vmatprep.subr.bf16.mxu0 %v558
        %604 = vmatpush1.bf16.msra.mxu0 %v557
        %605 = vmatprep.subr.bf16.mxu0 %v561
        %606 = vmatpush1.bf16.msra.mxu0 %v560
        %607 = vmatprep.subr.bf16.mxu0 0
        %608 = vmatpush1.bf16.msra.mxu0 0
        %609 = vmatprep.subr.bf16.mxu0 0
        %610 = vmatpush1.bf16.msra.mxu0 0
        %611 = vmatprep.subr.bf16.mxu0 0
        %612 = vmatpush1.bf16.msra.mxu0 0
        %613 = vmatprep.subr.bf16.mxu0 0
        %614 = vmatpush1.bf16.msra.mxu0 0
        %615 = vmatprep.subr.bf16.mxu0 0
        %616 = vmatpush1.bf16.msra.mxu0 0
        %617 = vmatprep.subr.bf16.mxu0 0
        %618 = vmatpush1.bf16.msra.mxu0 0
        %619 = vmatprep.subr.bf16.mxu0 0
        %620 = vmatpush1.bf16.msra.mxu0 0
        %621 = vmatprep.subr.bf16.mxu0 0
        %622 = vmatpush1.bf16.msra.mxu0 0
        %623 = vmatprep.subr.bf16.mxu0 0
        %624 = vmatpush1.bf16.msra.mxu0 0
        %625 = vmatprep.subr.bf16.mxu0 0
        %626 = vmatpush1.bf16.msra.mxu0 0
        %627 = vmatprep.subr.bf16.mxu0 0
        %628 = vmatpush1.bf16.msra.mxu0 0
        %629 = vmatprep.subr.bf16.mxu0 0
        %630 = vmatpush1.bf16.msra.mxu0 0
        %631 = vmatprep.mubr.bf16.mxu0 0
        %632 = vmatmul.mubr.bf16.gmra.mrb[0].mxu0 %v576
        %v633 = vpop.f32.mrb[0].mxu0
        %v634 = vadd.f32 %v499, %v633
        %v635 = vpop.f32.mrb[0].mxu0
        %v636 = vadd.f32 %v503, %v635
        %v637 = vpop.f32.mrb[0].mxu0
        %v638 = vadd.f32 %v499, %v637
        %v639 = vpop.f32.mrb[0].mxu0
        %v640 = vadd.f32 %v503, %v639
        %641 = vmatprep.mubr.bf16.mxu0 0
        %642 = vmatmul.mubr.bf16.gmra.mrb[0].mxu0 %v579
        %v643 = vpop.f32.mrb[0].mxu0
        %v644 = vadd.f32 %v499, %v643
        %v645 = vpop.f32.mrb[0].mxu0
        %v646 = vadd.f32 %v503, %v645
        %v647 = vpop.f32.mrb[0].mxu0
        %v648 = vadd.f32 %v499, %v647
        %v649 = vpop.f32.mrb[0].mxu0
        %v650 = vadd.f32 %v503, %v649
        %651 = vmatprep.mubr.bf16.mxu0 0
        %652 = vmatmul.mubr.bf16.gmra.mrb[0].mxu0 %v582
        %v653 = vpop.f32.mrb[0].mxu0
        %v654 = vadd.f32 %v499, %v653
        %v655 = vpop.f32.mrb[0].mxu0
        %v656 = vadd.f32 %v503, %v655
        %v657 = vpop.f32.mrb[0].mxu0
        %v658 = vadd.f32 %v499, %v657
        %v659 = vpop.f32.mrb[0].mxu0
        %v660 = vadd.f32 %v503, %v659
        %661 = vmatprep.mubr.bf16.mxu0 0
        %662 = vmatmul.mubr.bf16.gmra.mrb[0].mxu0 %v585
        %v663 = vpop.f32.mrb[0].mxu0
        %v664 = vadd.f32 %v499, %v663
        %v665 = vpop.f32.mrb[0].mxu0
        %v666 = vadd.f32 %v503, %v665
        %v667 = vpop.f32.mrb[0].mxu0
        %v668 = vadd.f32 %v499, %v667
        %v669 = vpop.f32.mrb[0].mxu0
        %v670 = vadd.f32 %v503, %v669
        %671 = vmatprep.mubr.bf16.mxu0 0
        %672 = vmatmul.mubr.bf16.gmra.mrb[0].mxu0 %v588
        %v673 = vpop.f32.mrb[0].mxu0
        %v674 = vadd.f32 %v499, %v673
        %v675 = vpop.f32.mrb[0].mxu0
        %v676 = vadd.f32 %v503, %v675
        %v677 = vpop.f32.mrb[0].mxu0
        %v678 = vadd.f32 %v499, %v677
        %v679 = vpop.f32.mrb[0].mxu0
        %v680 = vadd.f32 %v503, %v679
        %681 = vmatprep.mubr.bf16.mxu0 0
        %682 = vmatmul.mubr.bf16.gmra.mrb[0].mxu0 %v591
        %v683 = vpop.f32.mrb[0].mxu0
        %v684 = vadd.f32 %v499, %v683
        %v685 = vpop.f32.mrb[0].mxu0
        %v686 = vadd.f32 %v503, %v685
        %v687 = vpop.f32.mrb[0].mxu0
        %v688 = vadd.f32 %v499, %v687
        %v689 = vpop.f32.mrb[0].mxu0
        %v690 = vadd.f32 %v503, %v689
        %691 = vmatprep.mubr.bf16.mxu0 0
        %692 = vmatmul.mubr.bf16.gmra.mrb[0].mxu0 %v594
        %v693 = vpop.f32.mrb[0].mxu0
        %v694 = vadd.f32 %v499, %v693
        %v695 = vpop.f32.mrb[0].mxu0
        %v696 = vadd.f32 %v503, %v695
        %v697 = vpop.f32.mrb[0].mxu0
        %v698 = vadd.f32 %v499, %v697
        %v699 = vpop.f32.mrb[0].mxu0
        %v700 = vadd.f32 %v503, %v699
        %701 = vmatprep.mubr.bf16.mxu0 0
        %702 = vmatmul.mubr.bf16.gmra.mrb[0].mxu0 %v597
        %v703 = vpop.f32.mrb[0].mxu0
        %v704 = vadd.f32 %v499, %v703
        %v705 = vpop.f32.mrb[0].mxu0
        %v706 = vadd.f32 %v503, %v705
        %v707 = vpop.f32.mrb[0].mxu0
        %v708 = vadd.f32 %v499, %v707
        %v709 = vpop.f32.mrb[0].mxu0
        %v710 = vadd.f32 %v503, %v709
        %711 = vdwg.mxu0
        %712 = vmatprep.subr.bf16.mxu0 0
        %713 = vmatpush1.bf16.msra.mxu0 %v553
        %714 = vmatprep.subr.bf16.mxu0 0
        %715 = vmatpush1.bf16.msra.mxu0 %v556
        %716 = vmatprep.subr.bf16.mxu0 0
        %717 = vmatpush1.bf16.msra.mxu0 %v559
        %718 = vmatprep.subr.bf16.mxu0 0
        %719 = vmatpush1.bf16.msra.mxu0 %v562
        %720 = vmatprep.subr.bf16.mxu0 0
        %721 = vmatpush1.bf16.msra.mxu0 0
        %722 = vmatprep.subr.bf16.mxu0 0
        %723 = vmatpush1.bf16.msra.mxu0 0
        %724 = vmatprep.subr.bf16.mxu0 0
        %725 = vmatpush1.bf16.msra.mxu0 0
        %726 = vmatprep.subr.bf16.mxu0 0
        %727 = vmatpush1.bf16.msra.mxu0 0
        %728 = vmatprep.subr.bf16.mxu0 0
        %729 = vmatpush1.bf16.msra.mxu0 0
        %730 = vmatprep.subr.bf16.mxu0 0
        %731 = vmatpush1.bf16.msra.mxu0 0
        %732 = vmatprep.subr.bf16.mxu0 0
        %733 = vmatpush1.bf16.msra.mxu0 0
        %734 = vmatprep.subr.bf16.mxu0 0
        %735 = vmatpush1.bf16.msra.mxu0 0
        %736 = vmatprep.subr.bf16.mxu0 0
        %737 = vmatpush1.bf16.msra.mxu0 0
        %738 = vmatprep.subr.bf16.mxu0 0
        %739 = vmatpush1.bf16.msra.mxu0 0
        %740 = vmatprep.subr.bf16.mxu0 0
        %741 = vmatpush1.bf16.msra.mxu0 0
        %742 = vmatprep.subr.bf16.mxu0 0
        %743 = vmatpush1.bf16.msra.mxu0 0
        %744 = vmatprep.mubr.bf16.mxu0 0
        %745 = vmatmul.mubr.bf16.gmra.mrb[0].mxu0 %v576
        %v746 = vpop.f32.mrb[0].mxu0
        %v747 = vadd.f32 %v507, %v746
        %v748 = vpop.f32.mrb[0].mxu0
        %v749 = vpop.f32.mrb[0].mxu0
        %v750 = vadd.f32 %v507, %v749
        %v751 = vpop.f32.mrb[0].mxu0
        %752 = vmatprep.mubr.bf16.mxu0 0
        %753 = vmatmul.mubr.bf16.gmra.mrb[0].mxu0 %v579
        %v754 = vpop.f32.mrb[0].mxu0
        %v755 = vadd.f32 %v507, %v754
        %v756 = vpop.f32.mrb[0].mxu0
        %v757 = vpop.f32.mrb[0].mxu0
        %v758 = vadd.f32 %v507, %v757
        %v759 = vpop.f32.mrb[0].mxu0
        %760 = vmatprep.mubr.bf16.mxu0 0
        %761 = vmatmul.mubr.bf16.gmra.mrb[0].mxu0 %v582
        %v762 = vpop.f32.mrb[0].mxu0
        %v763 = vadd.f32 %v507, %v762
        %v764 = vpop.f32.mrb[0].mxu0
        %v765 = vpop.f32.mrb[0].mxu0
        %v766 = vadd.f32 %v507, %v765
        %v767 = vpop.f32.mrb[0].mxu0
        %768 = vmatprep.mubr.bf16.mxu0 0
        %769 = vmatmul.mubr.bf16.gmra.mrb[0].mxu0 %v585
        %v770 = vpop.f32.mrb[0].mxu0
        %v771 = vadd.f32 %v507, %v770
        %v772 = vpop.f32.mrb[0].mxu0
        %v773 = vpop.f32.mrb[0].mxu0
        %v774 = vadd.f32 %v507, %v773
        %v775 = vpop.f32.mrb[0].mxu0
        %776 = vmatprep.mubr.bf16.mxu0 0
        %777 = vmatmul.mubr.bf16.gmra.mrb[0].mxu0 %v588
        %v778 = vpop.f32.mrb[0].mxu0
        %v779 = vadd.f32 %v507, %v778
        %v780 = vpop.f32.mrb[0].mxu0
        %v781 = vpop.f32.mrb[0].mxu0
        %v782 = vadd.f32 %v507, %v781
        %v783 = vpop.f32.mrb[0].mxu0
        %784 = vmatprep.mubr.bf16.mxu0 0
        %785 = vmatmul.mubr.bf16.gmra.mrb[0].mxu0 %v591
        %v786 = vpop.f32.mrb[0].mxu0
        %v787 = vadd.f32 %v507, %v786
        %v788 = vpop.f32.mrb[0].mxu0
        %v789 = vpop.f32.mrb[0].mxu0
        %v790 = vadd.f32 %v507, %v789
        %v791 = vpop.f32.mrb[0].mxu0
        %792 = vmatprep.mubr.bf16.mxu0 0
        %793 = vmatmul.mubr.bf16.gmra.mrb[0].mxu0 %v594
        %v794 = vpop.f32.mrb[0].mxu0
        %v795 = vadd.f32 %v507, %v794
        %v796 = vpop.f32.mrb[0].mxu0
        %v797 = vpop.f32.mrb[0].mxu0
        %v798 = vadd.f32 %v507, %v797
        %v799 = vpop.f32.mrb[0].mxu0
        %800 = vmatprep.mubr.bf16.mxu0 0
        %801 = vmatmul.mubr.bf16.gmra.mrb[0].mxu0 %v597
        %v802 = vpop.f32.mrb[0].mxu0
        %v803 = vadd.f32 %v507, %v802
        %v804 = vpop.f32.mrb[0].mxu0
        %v805 = vpop.f32.mrb[0].mxu0
        %v806 = vadd.f32 %v507, %v805
        %v807 = vpop.f32.mrb[0].mxu0
        %808 = vdwg.mxu0
        %v810 = vlaneseq
        %v811 = vshrl.u32 %v810, 7
        %v812 = vsub.s32 0, %v811
        %v813 = vrot.slane %v494, %v812
        %v814 = vlaneseq
        %v815 = vshrl.u32 %v814, 7
        %v816 = vsub.s32 1, %v815
        %v817 = vrot.slane %v494, %v816
        %v818 = vlaneseq
        %v819 = vshrl.u32 %v818, 7
        %v820 = vsub.s32 2, %v819
        %v821 = vrot.slane %v494, %v820
        %v841 = vunpack.c.l.b16 %v478
        %v842 = vunpack.c.h.b16 %v478
        %v843 = vunpack.c.l.b16 %v479
        %v844 = vunpack.c.l.b16 %v480
        %v845 = vunpack.c.h.b16 %v480
        %v846 = vunpack.c.l.b16 %v481
        %v847 = vunpack.c.l.b16 %v482
        %v848 = vunpack.c.h.b16 %v482
        %v849 = vunpack.c.l.b16 %v483
        %v850 = vunpack.c.l.b16 %v484
        %v851 = vunpack.c.h.b16 %v484
        %v852 = vunpack.c.l.b16 %v485
        %v853 = vunpack.c.l.b16 %v486
        %v854 = vunpack.c.h.b16 %v486
        %v855 = vunpack.c.l.b16 %v487
        %v856 = vunpack.c.l.b16 %v488
        %v857 = vunpack.c.h.b16 %v488
        %v858 = vunpack.c.l.b16 %v489
        %v859 = vunpack.c.l.b16 %v490
        %v860 = vunpack.c.h.b16 %v490
        %v861 = vunpack.c.l.b16 %v491
        %v862 = vunpack.c.l.b16 %v492
        %v863 = vunpack.c.h.b16 %v492
        %v864 = vunpack.c.l.b16 %v493
        %v865 = vpack.c.b16 %v844, %v841
        %v866 = vpack.c.b16 %v845, %v842
        %v867 = vpack.c.b16 %v846, %v843
        %v868 = vpack.c.b16 %v850, %v847
        %v869 = vpack.c.b16 %v851, %v848
        %v870 = vpack.c.b16 %v852, %v849
        %v871 = vpack.c.b16 %v856, %v853
        %v872 = vpack.c.b16 %v857, %v854
        %v873 = vpack.c.b16 %v858, %v855
        %v874 = vpack.c.b16 %v862, %v859
        %v875 = vpack.c.b16 %v863, %v860
        %v876 = vpack.c.b16 %v864, %v861
        %889 = vmatprep.subr.bf16.mxu0 %v866
        %890 = vmatpush1.bf16.msra.mxu0 %v865
        %891 = vmatprep.subr.bf16.mxu0 %v869
        %892 = vmatpush1.bf16.msra.mxu0 %v868
        %893 = vmatprep.subr.bf16.mxu0 %v872
        %894 = vmatpush1.bf16.msra.mxu0 %v871
        %895 = vmatprep.subr.bf16.mxu0 %v875
        %896 = vmatpush1.bf16.msra.mxu0 %v874
        %897 = vmatprep.subr.bf16.mxu0 0
        %898 = vmatpush1.bf16.msra.mxu0 0
        %899 = vmatprep.subr.bf16.mxu0 0
        %900 = vmatpush1.bf16.msra.mxu0 0
        %901 = vmatprep.subr.bf16.mxu0 0
        %902 = vmatpush1.bf16.msra.mxu0 0
        %903 = vmatprep.subr.bf16.mxu0 0
        %904 = vmatpush1.bf16.msra.mxu0 0
        %905 = vmatprep.subr.bf16.mxu0 0
        %906 = vmatpush1.bf16.msra.mxu0 0
        %907 = vmatprep.subr.bf16.mxu0 0
        %908 = vmatpush1.bf16.msra.mxu0 0
        %909 = vmatprep.subr.bf16.mxu0 0
        %910 = vmatpush1.bf16.msra.mxu0 0
        %911 = vmatprep.subr.bf16.mxu0 0
        %912 = vmatpush1.bf16.msra.mxu0 0
        %913 = vmatprep.subr.bf16.mxu0 0
        %914 = vmatpush1.bf16.msra.mxu0 0
        %915 = vmatprep.subr.bf16.mxu0 0
        %916 = vmatpush1.bf16.msra.mxu0 0
        %917 = vmatprep.subr.bf16.mxu0 0
        %918 = vmatpush1.bf16.msra.mxu0 0
        %919 = vmatprep.subr.bf16.mxu0 0
        %920 = vmatpush1.bf16.msra.mxu0 0
        %921 = vmatprep.mubr.bf16.mxu0 0
        %922 = vmatmul.mubr.bf16.gmra.mrb[0].mxu0 %v576
        %v923 = vpop.f32.mrb[0].mxu0
        %v924 = vadd.f32 %v813, %v923
        %v925 = vpop.f32.mrb[0].mxu0
        %v926 = vadd.f32 %v817, %v925
        %v927 = vpop.f32.mrb[0].mxu0
        %v928 = vadd.f32 %v813, %v927
        %v929 = vpop.f32.mrb[0].mxu0
        %v930 = vadd.f32 %v817, %v929
        %931 = vmatprep.mubr.bf16.mxu0 0
        %932 = vmatmul.mubr.bf16.gmra.mrb[0].mxu0 %v579
        %v933 = vpop.f32.mrb[0].mxu0
        %v934 = vadd.f32 %v813, %v933
        %v935 = vpop.f32.mrb[0].mxu0
        %v936 = vadd.f32 %v817, %v935
        %v937 = vpop.f32.mrb[0].mxu0
        %v938 = vadd.f32 %v813, %v937
        %v939 = vpop.f32.mrb[0].mxu0
        %v940 = vadd.f32 %v817, %v939
        %941 = vmatprep.mubr.bf16.mxu0 0
        %942 = vmatmul.mubr.bf16.gmra.mrb[0].mxu0 %v582
        %v943 = vpop.f32.mrb[0].mxu0
        %v944 = vadd.f32 %v813, %v943
        %v945 = vpop.f32.mrb[0].mxu0
        %v946 = vadd.f32 %v817, %v945
        %v947 = vpop.f32.mrb[0].mxu0
        %v948 = vadd.f32 %v813, %v947
        %v949 = vpop.f32.mrb[0].mxu0
        %v950 = vadd.f32 %v817, %v949
        %951 = vmatprep.mubr.bf16.mxu0 0
        %952 = vmatmul.mubr.bf16.gmra.mrb[0].mxu0 %v585
        %v953 = vpop.f32.mrb[0].mxu0
        %v954 = vadd.f32 %v813, %v953
        %v955 = vpop.f32.mrb[0].mxu0
        %v956 = vadd.f32 %v817, %v955
        %v957 = vpop.f32.mrb[0].mxu0
        %v958 = vadd.f32 %v813, %v957
        %v959 = vpop.f32.mrb[0].mxu0
        %v960 = vadd.f32 %v817, %v959
        %961 = vmatprep.mubr.bf16.mxu0 0
        %962 = vmatmul.mubr.bf16.gmra.mrb[0].mxu0 %v588
        %v963 = vpop.f32.mrb[0].mxu0
        %v964 = vadd.f32 %v813, %v963
        %v965 = vpop.f32.mrb[0].mxu0
        %v966 = vadd.f32 %v817, %v965
        %v967 = vpop.f32.mrb[0].mxu0
        %v968 = vadd.f32 %v813, %v967
        %v969 = vpop.f32.mrb[0].mxu0
        %v970 = vadd.f32 %v817, %v969
        %971 = vmatprep.mubr.bf16.mxu0 0
        %972 = vmatmul.mubr.bf16.gmra.mrb[0].mxu0 %v591
        %v973 = vpop.f32.mrb[0].mxu0
        %v974 = vadd.f32 %v813, %v973
        %v975 = vpop.f32.mrb[0].mxu0
        %v976 = vadd.f32 %v817, %v975
        %v977 = vpop.f32.mrb[0].mxu0
        %v978 = vadd.f32 %v813, %v977
        %v979 = vpop.f32.mrb[0].mxu0
        %v980 = vadd.f32 %v817, %v979
        %981 = vmatprep.mubr.bf16.mxu0 0
        %982 = vmatmul.mubr.bf16.gmra.mrb[0].mxu0 %v594
        %v983 = vpop.f32.mrb[0].mxu0
        %v984 = vadd.f32 %v813, %v983
        %v985 = vpop.f32.mrb[0].mxu0
        %v986 = vadd.f32 %v817, %v985
        %v987 = vpop.f32.mrb[0].mxu0
        %v988 = vadd.f32 %v813, %v987
        %v989 = vpop.f32.mrb[0].mxu0
        %v990 = vadd.f32 %v817, %v989
        %991 = vmatprep.mubr.bf16.mxu0 0
        %992 = vmatmul.mubr.bf16.gmra.mrb[0].mxu0 %v597
        %v993 = vpop.f32.mrb[0].mxu0
        %v994 = vadd.f32 %v813, %v993
        %v995 = vpop.f32.mrb[0].mxu0
        %v996 = vadd.f32 %v817, %v995
        %v997 = vpop.f32.mrb[0].mxu0
        %v998 = vadd.f32 %v813, %v997
        %v999 = vpop.f32.mrb[0].mxu0
        %v1000 = vadd.f32 %v817, %v999
        %1001 = vdwg.mxu0
        %1002 = vmatprep.subr.bf16.mxu0 0
        %1003 = vmatpush1.bf16.msra.mxu0 %v867
        %1004 = vmatprep.subr.bf16.mxu0 0
        %1005 = vmatpush1.bf16.msra.mxu0 %v870
        %1006 = vmatprep.subr.bf16.mxu0 0
        %1007 = vmatpush1.bf16.msra.mxu0 %v873
        %1008 = vmatprep.subr.bf16.mxu0 0
        %1009 = vmatpush1.bf16.msra.mxu0 %v876
        %1010 = vmatprep.subr.bf16.mxu0 0
        %1011 = vmatpush1.bf16.msra.mxu0 0
        %1012 = vmatprep.subr.bf16.mxu0 0
        %1013 = vmatpush1.bf16.msra.mxu0 0
        %1014 = vmatprep.subr.bf16.mxu0 0
        %1015 = vmatpush1.bf16.msra.mxu0 0
        %1016 = vmatprep.subr.bf16.mxu0 0
        %1017 = vmatpush1.bf16.msra.mxu0 0
        %1018 = vmatprep.subr.bf16.mxu0 0
        %1019 = vmatpush1.bf16.msra.mxu0 0
        %1020 = vmatprep.subr.bf16.mxu0 0
        %1021 = vmatpush1.bf16.msra.mxu0 0
        %1022 = vmatprep.subr.bf16.mxu0 0
        %1023 = vmatpush1.bf16.msra.mxu0 0
        %1024 = vmatprep.subr.bf16.mxu0 0
        %1025 = vmatpush1.bf16.msra.mxu0 0
        %1026 = vmatprep.subr.bf16.mxu0 0
        %1027 = vmatpush1.bf16.msra.mxu0 0
        %1028 = vmatprep.subr.bf16.mxu0 0
        %1029 = vmatpush1.bf16.msra.mxu0 0
        %1030 = vmatprep.subr.bf16.mxu0 0
        %1031 = vmatpush1.bf16.msra.mxu0 0
        %1032 = vmatprep.subr.bf16.mxu0 0
        %1033 = vmatpush1.bf16.msra.mxu0 0
        %1034 = vmatprep.mubr.bf16.mxu0 0
        %1035 = vmatmul.mubr.bf16.gmra.mrb[0].mxu0 %v576
        %v1036 = vpop.f32.mrb[0].mxu0
        %v1037 = vadd.f32 %v821, %v1036
        %v1038 = vpop.f32.mrb[0].mxu0
        %v1039 = vpop.f32.mrb[0].mxu0
        %v1040 = vadd.f32 %v821, %v1039
        %v1041 = vpop.f32.mrb[0].mxu0
        %1042 = vmatprep.mubr.bf16.mxu0 0
        %1043 = vmatmul.mubr.bf16.gmra.mrb[0].mxu0 %v579
        %v1044 = vpop.f32.mrb[0].mxu0
        %v1045 = vadd.f32 %v821, %v1044
        %v1046 = vpop.f32.mrb[0].mxu0
        %v1047 = vpop.f32.mrb[0].mxu0
        %v1048 = vadd.f32 %v821, %v1047
        %v1049 = vpop.f32.mrb[0].mxu0
        %1050 = vmatprep.mubr.bf16.mxu0 0
        %1051 = vmatmul.mubr.bf16.gmra.mrb[0].mxu0 %v582
        %v1052 = vpop.f32.mrb[0].mxu0
        %v1053 = vadd.f32 %v821, %v1052
        %v1054 = vpop.f32.mrb[0].mxu0
        %v1055 = vpop.f32.mrb[0].mxu0
        %v1056 = vadd.f32 %v821, %v1055
        %v1057 = vpop.f32.mrb[0].mxu0
        %1058 = vmatprep.mubr.bf16.mxu0 0
        %1059 = vmatmul.mubr.bf16.gmra.mrb[0].mxu0 %v585
        %v1060 = vpop.f32.mrb[0].mxu0
        %v1061 = vadd.f32 %v821, %v1060
        %v1062 = vpop.f32.mrb[0].mxu0
        %v1063 = vpop.f32.mrb[0].mxu0
        %v1064 = vadd.f32 %v821, %v1063
        %v1065 = vpop.f32.mrb[0].mxu0
        %1066 = vmatprep.mubr.bf16.mxu0 0
        %1067 = vmatmul.mubr.bf16.gmra.mrb[0].mxu0 %v588
        %v1068 = vpop.f32.mrb[0].mxu0
        %v1069 = vadd.f32 %v821, %v1068
        %v1070 = vpop.f32.mrb[0].mxu0
        %v1071 = vpop.f32.mrb[0].mxu0
        %v1072 = vadd.f32 %v821, %v1071
        %v1073 = vpop.f32.mrb[0].mxu0
        %1074 = vmatprep.mubr.bf16.mxu0 0
        %1075 = vmatmul.mubr.bf16.gmra.mrb[0].mxu0 %v591
        %v1076 = vpop.f32.mrb[0].mxu0
        %v1077 = vadd.f32 %v821, %v1076
        %v1078 = vpop.f32.mrb[0].mxu0
        %v1079 = vpop.f32.mrb[0].mxu0
        %v1080 = vadd.f32 %v821, %v1079
        %v1081 = vpop.f32.mrb[0].mxu0
        %1082 = vmatprep.mubr.bf16.mxu0 0
        %1083 = vmatmul.mubr.bf16.gmra.mrb[0].mxu0 %v594
        %v1084 = vpop.f32.mrb[0].mxu0
        %v1085 = vadd.f32 %v821, %v1084
        %v1086 = vpop.f32.mrb[0].mxu0
        %v1087 = vpop.f32.mrb[0].mxu0
        %v1088 = vadd.f32 %v821, %v1087
        %v1089 = vpop.f32.mrb[0].mxu0
        %1090 = vmatprep.mubr.bf16.mxu0 0
        %1091 = vmatmul.mubr.bf16.gmra.mrb[0].mxu0 %v597
        %v1092 = vpop.f32.mrb[0].mxu0
        %v1093 = vadd.f32 %v821, %v1092
        %v1094 = vpop.f32.mrb[0].mxu0
        %v1095 = vpop.f32.mrb[0].mxu0
        %v1096 = vadd.f32 %v821, %v1095
        %v1097 = vpop.f32.mrb[0].mxu0
        %1098 = vdwg.mxu0
        %v1099 = vsub.f32 0.0, %v634
        %v1100 = vsub.f32 0.0, %v636
        %v1101 = vsub.f32 0.0, %v747
        %v1102 = vsub.f32 0.0, %v638
        %v1103 = vsub.f32 0.0, %v640
        %v1104 = vsub.f32 0.0, %v750
        %v1105 = vsub.f32 0.0, %v644
        %v1106 = vsub.f32 0.0, %v646
        %v1107 = vsub.f32 0.0, %v755
        %v1108 = vsub.f32 0.0, %v648
        %v1109 = vsub.f32 0.0, %v650
        %v1110 = vsub.f32 0.0, %v758
        %v1111 = vsub.f32 0.0, %v654
        %v1112 = vsub.f32 0.0, %v656
        %v1113 = vsub.f32 0.0, %v763
        %v1114 = vsub.f32 0.0, %v658
        %v1115 = vsub.f32 0.0, %v660
        %v1116 = vsub.f32 0.0, %v766
        %v1117 = vsub.f32 0.0, %v664
        %v1118 = vsub.f32 0.0, %v666
        %v1119 = vsub.f32 0.0, %v771
        %v1120 = vsub.f32 0.0, %v668
        %v1121 = vsub.f32 0.0, %v670
        %v1122 = vsub.f32 0.0, %v774
        %v1123 = vsub.f32 0.0, %v674
        %v1124 = vsub.f32 0.0, %v676
        %v1125 = vsub.f32 0.0, %v779
        %v1126 = vsub.f32 0.0, %v678
        %v1127 = vsub.f32 0.0, %v680
        %v1128 = vsub.f32 0.0, %v782
        %v1129 = vsub.f32 0.0, %v684
        %v1130 = vsub.f32 0.0, %v686
        %v1131 = vsub.f32 0.0, %v787
        %v1132 = vsub.f32 0.0, %v688
        %v1133 = vsub.f32 0.0, %v690
        %v1134 = vsub.f32 0.0, %v790
        %v1135 = vsub.f32 0.0, %v694
        %v1136 = vsub.f32 0.0, %v696
        %v1137 = vsub.f32 0.0, %v795
        %v1138 = vsub.f32 0.0, %v698
        %v1139 = vsub.f32 0.0, %v700
        %v1140 = vsub.f32 0.0, %v798
        %v1141 = vsub.f32 0.0, %v704
        %v1142 = vsub.f32 0.0, %v706
        %v1143 = vsub.f32 0.0, %v803
        %v1144 = vsub.f32 0.0, %v708
        %v1145 = vsub.f32 0.0, %v710
        %v1146 = vsub.f32 0.0, %v806
        %v1147 = vmul.f32 %v1099, 1.442695
        %v1148 = vpow.pop %v1147
        %v1149 = vmul.f32 %v1100, 1.442695
        %v1150 = vpow.pop %v1149
        %v1151 = vmul.f32 %v1101, 1.442695
        %v1152 = vpow.pop %v1151
        %v1153 = vmul.f32 %v1102, 1.442695
        %v1154 = vpow.pop %v1153
        %v1155 = vmul.f32 %v1103, 1.442695
        %v1156 = vpow.pop %v1155
        %v1157 = vmul.f32 %v1104, 1.442695
        %v1158 = vpow.pop %v1157
        %v1159 = vmul.f32 %v1105, 1.442695
        %v1160 = vpow.pop %v1159
        %v1161 = vmul.f32 %v1106, 1.442695
        %v1162 = vpow.pop %v1161
        %v1163 = vmul.f32 %v1107, 1.442695
        %v1164 = vpow.pop %v1163
        %v1165 = vmul.f32 %v1108, 1.442695
        %v1166 = vpow.pop %v1165
        %v1167 = vmul.f32 %v1109, 1.442695
        %v1168 = vpow.pop %v1167
        %v1169 = vmul.f32 %v1110, 1.442695
        %v1170 = vpow.pop %v1169
        %v1171 = vmul.f32 %v1111, 1.442695
        %v1172 = vpow.pop %v1171
        %v1173 = vmul.f32 %v1112, 1.442695
        %v1174 = vpow.pop %v1173
        %v1175 = vmul.f32 %v1113, 1.442695
        %v1176 = vpow.pop %v1175
        %v1177 = vmul.f32 %v1114, 1.442695
        %v1178 = vpow.pop %v1177
        %v1179 = vmul.f32 %v1115, 1.442695
        %v1180 = vpow.pop %v1179
        %v1181 = vmul.f32 %v1116, 1.442695
        %v1182 = vpow.pop %v1181
        %v1183 = vmul.f32 %v1117, 1.442695
        %v1184 = vpow.pop %v1183
        %v1185 = vmul.f32 %v1118, 1.442695
        %v1186 = vpow.pop %v1185
        %v1187 = vmul.f32 %v1119, 1.442695
        %v1188 = vpow.pop %v1187
        %v1189 = vmul.f32 %v1120, 1.442695
        %v1190 = vpow.pop %v1189
        %v1191 = vmul.f32 %v1121, 1.442695
        %v1192 = vpow.pop %v1191
        %v1193 = vmul.f32 %v1122, 1.442695
        %v1194 = vpow.pop %v1193
        %v1195 = vmul.f32 %v1123, 1.442695
        %v1196 = vpow.pop %v1195
        %v1197 = vmul.f32 %v1124, 1.442695
        %v1198 = vpow.pop %v1197
        %v1199 = vmul.f32 %v1125, 1.442695
        %v1200 = vpow.pop %v1199
        %v1201 = vmul.f32 %v1126, 1.442695
        %v1202 = vpow.pop %v1201
        %v1203 = vmul.f32 %v1127, 1.442695
        %v1204 = vpow.pop %v1203
        %v1205 = vmul.f32 %v1128, 1.442695
        %v1206 = vpow.pop %v1205
        %v1207 = vmul.f32 %v1129, 1.442695
        %v1208 = vpow.pop %v1207
        %v1209 = vmul.f32 %v1130, 1.442695
        %v1210 = vpow.pop %v1209
        %v1211 = vmul.f32 %v1131, 1.442695
        %v1212 = vpow.pop %v1211
        %v1213 = vmul.f32 %v1132, 1.442695
        %v1214 = vpow.pop %v1213
        %v1215 = vmul.f32 %v1133, 1.442695
        %v1216 = vpow.pop %v1215
        %v1217 = vmul.f32 %v1134, 1.442695
        %v1218 = vpow.pop %v1217
        %v1219 = vmul.f32 %v1135, 1.442695
        %v1220 = vpow.pop %v1219
        %v1221 = vmul.f32 %v1136, 1.442695
        %v1222 = vpow.pop %v1221
        %v1223 = vmul.f32 %v1137, 1.442695
        %v1224 = vpow.pop %v1223
        %v1225 = vmul.f32 %v1138, 1.442695
        %v1226 = vpow.pop %v1225
        %v1227 = vmul.f32 %v1139, 1.442695
        %v1228 = vpow.pop %v1227
        %v1229 = vmul.f32 %v1140, 1.442695
        %v1230 = vpow.pop %v1229
        %v1231 = vmul.f32 %v1141, 1.442695
        %v1232 = vpow.pop %v1231
        %v1233 = vmul.f32 %v1142, 1.442695
        %v1234 = vpow.pop %v1233
        %v1235 = vmul.f32 %v1143, 1.442695
        %v1236 = vpow.pop %v1235
        %v1237 = vmul.f32 %v1144, 1.442695
        %v1238 = vpow.pop %v1237
        %v1239 = vmul.f32 %v1145, 1.442695
        %v1240 = vpow.pop %v1239
        %v1241 = vmul.f32 %v1146, 1.442695
        %v1242 = vpow.pop %v1241
        %v1243 = vadd.f32 %v1148, 1.0
        %v1244 = vadd.f32 %v1150, 1.0
        %v1245 = vadd.f32 %v1152, 1.0
        %v1246 = vadd.f32 %v1154, 1.0
        %v1247 = vadd.f32 %v1156, 1.0
        %v1248 = vadd.f32 %v1158, 1.0
        %v1249 = vadd.f32 %v1160, 1.0
        %v1250 = vadd.f32 %v1162, 1.0
        %v1251 = vadd.f32 %v1164, 1.0
        %v1252 = vadd.f32 %v1166, 1.0
        %v1253 = vadd.f32 %v1168, 1.0
        %v1254 = vadd.f32 %v1170, 1.0
        %v1255 = vadd.f32 %v1172, 1.0
        %v1256 = vadd.f32 %v1174, 1.0
        %v1257 = vadd.f32 %v1176, 1.0
        %v1258 = vadd.f32 %v1178, 1.0
        %v1259 = vadd.f32 %v1180, 1.0
        %v1260 = vadd.f32 %v1182, 1.0
        %v1261 = vadd.f32 %v1184, 1.0
        %v1262 = vadd.f32 %v1186, 1.0
        %v1263 = vadd.f32 %v1188, 1.0
        %v1264 = vadd.f32 %v1190, 1.0
        %v1265 = vadd.f32 %v1192, 1.0
        %v1266 = vadd.f32 %v1194, 1.0
        %v1267 = vadd.f32 %v1196, 1.0
        %v1268 = vadd.f32 %v1198, 1.0
        %v1269 = vadd.f32 %v1200, 1.0
        %v1270 = vadd.f32 %v1202, 1.0
        %v1271 = vadd.f32 %v1204, 1.0
        %v1272 = vadd.f32 %v1206, 1.0
        %v1273 = vadd.f32 %v1208, 1.0
        %v1274 = vadd.f32 %v1210, 1.0
        %v1275 = vadd.f32 %v1212, 1.0
        %v1276 = vadd.f32 %v1214, 1.0
        %v1277 = vadd.f32 %v1216, 1.0
        %v1278 = vadd.f32 %v1218, 1.0
        %v1279 = vadd.f32 %v1220, 1.0
        %v1280 = vadd.f32 %v1222, 1.0
        %v1281 = vadd.f32 %v1224, 1.0
        %v1282 = vadd.f32 %v1226, 1.0
        %v1283 = vadd.f32 %v1228, 1.0
        %v1284 = vadd.f32 %v1230, 1.0
        %v1285 = vadd.f32 %v1232, 1.0
        %v1286 = vadd.f32 %v1234, 1.0
        %v1287 = vadd.f32 %v1236, 1.0
        %v1288 = vadd.f32 %v1238, 1.0
        %v1289 = vadd.f32 %v1240, 1.0
        %v1290 = vadd.f32 %v1242, 1.0
        %v1291 = vrcp.pop %v1243
        %v1292 = vrcp.pop %v1244
        %v1293 = vrcp.pop %v1245
        %v1294 = vrcp.pop %v1246
        %v1295 = vrcp.pop %v1247
        %v1296 = vrcp.pop %v1248
        %v1297 = vrcp.pop %v1249
        %v1298 = vrcp.pop %v1250
        %v1299 = vrcp.pop %v1251
        %v1300 = vrcp.pop %v1252
        %v1301 = vrcp.pop %v1253
        %v1302 = vrcp.pop %v1254
        %v1303 = vrcp.pop %v1255
        %v1304 = vrcp.pop %v1256
        %v1305 = vrcp.pop %v1257
        %v1306 = vrcp.pop %v1258
        %v1307 = vrcp.pop %v1259
        %v1308 = vrcp.pop %v1260
        %v1309 = vrcp.pop %v1261
        %v1310 = vrcp.pop %v1262
        %v1311 = vrcp.pop %v1263
        %v1312 = vrcp.pop %v1264
        %v1313 = vrcp.pop %v1265
        %v1314 = vrcp.pop %v1266
        %v1315 = vrcp.pop %v1267
        %v1316 = vrcp.pop %v1268
        %v1317 = vrcp.pop %v1269
        %v1318 = vrcp.pop %v1270
        %v1319 = vrcp.pop %v1271
        %v1320 = vrcp.pop %v1272
        %v1321 = vrcp.pop %v1273
        %v1322 = vrcp.pop %v1274
        %v1323 = vrcp.pop %v1275
        %v1324 = vrcp.pop %v1276
        %v1325 = vrcp.pop %v1277
        %v1326 = vrcp.pop %v1278
        %v1327 = vrcp.pop %v1279
        %v1328 = vrcp.pop %v1280
        %v1329 = vrcp.pop %v1281
        %v1330 = vrcp.pop %v1282
        %v1331 = vrcp.pop %v1283
        %v1332 = vrcp.pop %v1284
        %v1333 = vrcp.pop %v1285
        %v1334 = vrcp.pop %v1286
        %v1335 = vrcp.pop %v1287
        %v1336 = vrcp.pop %v1288
        %v1337 = vrcp.pop %v1289
        %v1338 = vrcp.pop %v1290
        %v1339 = vmul.f32 %v1291, %v924
        %v1340 = vmul.f32 %v1292, %v926
        %v1341 = vmul.f32 %v1293, %v1037
        %v1342 = vmul.f32 %v1294, %v928
        %v1343 = vmul.f32 %v1295, %v930
        %v1344 = vmul.f32 %v1296, %v1040
        %v1345 = vmul.f32 %v1297, %v934
        %v1346 = vmul.f32 %v1298, %v936
        %v1347 = vmul.f32 %v1299, %v1045
        %v1348 = vmul.f32 %v1300, %v938
        %v1349 = vmul.f32 %v1301, %v940
        %v1350 = vmul.f32 %v1302, %v1048
        %v1351 = vmul.f32 %v1303, %v944
        %v1352 = vmul.f32 %v1304, %v946
        %v1353 = vmul.f32 %v1305, %v1053
        %v1354 = vmul.f32 %v1306, %v948
        %v1355 = vmul.f32 %v1307, %v950
        %v1356 = vmul.f32 %v1308, %v1056
        %v1357 = vmul.f32 %v1309, %v954
        %v1358 = vmul.f32 %v1310, %v956
        %v1359 = vmul.f32 %v1311, %v1061
        %v1360 = vmul.f32 %v1312, %v958
        %v1361 = vmul.f32 %v1313, %v960
        %v1362 = vmul.f32 %v1314, %v1064
        %v1363 = vmul.f32 %v1315, %v964
        %v1364 = vmul.f32 %v1316, %v966
        %v1365 = vmul.f32 %v1317, %v1069
        %v1366 = vmul.f32 %v1318, %v968
        %v1367 = vmul.f32 %v1319, %v970
        %v1368 = vmul.f32 %v1320, %v1072
        %v1369 = vmul.f32 %v1321, %v974
        %v1370 = vmul.f32 %v1322, %v976
        %v1371 = vmul.f32 %v1323, %v1077
        %v1372 = vmul.f32 %v1324, %v978
        %v1373 = vmul.f32 %v1325, %v980
        %v1374 = vmul.f32 %v1326, %v1080
        %v1375 = vmul.f32 %v1327, %v984
        %v1376 = vmul.f32 %v1328, %v986
        %v1377 = vmul.f32 %v1329, %v1085
        %v1378 = vmul.f32 %v1330, %v988
        %v1379 = vmul.f32 %v1331, %v990
        %v1380 = vmul.f32 %v1332, %v1088
        %v1381 = vmul.f32 %v1333, %v994
        %v1382 = vmul.f32 %v1334, %v996
        %v1383 = vmul.f32 %v1335, %v1093
        %v1384 = vmul.f32 %v1336, %v998
        %v1385 = vmul.f32 %v1337, %v1000
        %v1386 = vmul.f32 %v1338, %v1096
        %v1387 = vadd.f32 %v1339, %v1340
        %v1388 = vadd.f32 %v1342, %v1343
        %v1389 = vadd.f32 %v1345, %v1346
        %v1390 = vadd.f32 %v1348, %v1349
        %v1391 = vadd.f32 %v1351, %v1352
        %v1392 = vadd.f32 %v1354, %v1355
        %v1393 = vadd.f32 %v1357, %v1358
        %v1394 = vadd.f32 %v1360, %v1361
        %v1395 = vadd.f32 %v1363, %v1364
        %v1396 = vadd.f32 %v1366, %v1367
        %v1397 = vadd.f32 %v1369, %v1370
        %v1398 = vadd.f32 %v1372, %v1373
        %v1399 = vadd.f32 %v1375, %v1376
        %v1400 = vadd.f32 %v1378, %v1379
        %v1401 = vadd.f32 %v1381, %v1382
        %v1402 = vadd.f32 %v1384, %v1385
        %v1403 = vadd.f32 %v1387, %v1341
        %v1404 = vadd.f32 %v1388, %v1344
        %v1405 = vadd.f32 %v1389, %v1347
        %v1406 = vadd.f32 %v1390, %v1350
        %v1407 = vadd.f32 %v1391, %v1353
        %v1408 = vadd.f32 %v1392, %v1356
        %v1409 = vadd.f32 %v1393, %v1359
        %v1410 = vadd.f32 %v1394, %v1362
        %v1411 = vadd.f32 %v1395, %v1365
        %v1412 = vadd.f32 %v1396, %v1368
        %v1413 = vadd.f32 %v1397, %v1371
        %v1414 = vadd.f32 %v1398, %v1374
        %v1415 = vadd.f32 %v1399, %v1377
        %v1416 = vadd.f32 %v1400, %v1380
        %v1417 = vadd.f32 %v1401, %v1383
        %v1418 = vadd.f32 %v1402, %v1386
        %1419 = vst [vmem:[%s218] sm:$0xff] %v1403
        %1420 = vst [vmem:[%s218 + $0x8] sm:$0xff] %v1404
        %1421 = vst [vmem:[%s218 + $0x10] sm:$0xff] %v1405
        %1422 = vst [vmem:[%s218 + $0x18] sm:$0xff] %v1406
        %1423 = vst [vmem:[%s218 + $0x20] sm:$0xff] %v1407
        %1424 = vst [vmem:[%s218 + $0x28] sm:$0xff] %v1408
        %1425 = vst [vmem:[%s218 + $0x30] sm:$0xff] %v1409
        %1426 = vst [vmem:[%s218 + $0x38] sm:$0xff] %v1410
        %1427 = vst [vmem:[%s218 + $0x40] sm:$0xff] %v1411
        %1428 = vst [vmem:[%s218 + $0x48] sm:$0xff] %v1412
        %1429 = vst [vmem:[%s218 + $0x50] sm:$0xff] %v1413
        %1430 = vst [vmem:[%s218 + $0x58] sm:$0xff] %v1414
        %1431 = vst [vmem:[%s218 + $0x60] sm:$0xff] %v1415
        %1432 = vst [vmem:[%s218 + $0x68] sm:$0xff] %v1416
        %1433 = vst [vmem:[%s218 + $0x70] sm:$0xff] %v1417
        %1434 = vst [vmem:[%s218 + $0x78] sm:$0xff] %v1418
        %v1435 = vadd.f32 %v1403, %v227
        %v1436 = vadd.f32 %v1404, %v228
        %v1437 = vadd.f32 %v1405, %v229
        %v1438 = vadd.f32 %v1406, %v230
        %v1439 = vadd.f32 %v1407, %v231
        %v1440 = vadd.f32 %v1408, %v232
        %v1441 = vadd.f32 %v1409, %v233
        %v1442 = vadd.f32 %v1410, %v234
        %v1443 = vadd.f32 %v1411, %v235
        %v1444 = vadd.f32 %v1412, %v236
        %v1445 = vadd.f32 %v1413, %v237
        %v1446 = vadd.f32 %v1414, %v238
        %v1447 = vadd.f32 %v1415, %v239
        %v1448 = vadd.f32 %v1416, %v240
        %v1449 = vadd.f32 %v1417, %v241
        %v1450 = vadd.f32 %v1418, %v242
        %vm1451 = vcmask 261120
        %1452 = vst.msk [vmem:[%s218] sm:$0xff] %vm1451, %v1435
        %1453 = vst.msk [vmem:[%s218 + $0x8] sm:$0xff] %vm1451, %v1436
        %1454 = vst.msk [vmem:[%s218 + $0x10] sm:$0xff] %vm1451, %v1437
        %1455 = vst.msk [vmem:[%s218 + $0x18] sm:$0xff] %vm1451, %v1438
        %1456 = vst.msk [vmem:[%s218 + $0x20] sm:$0xff] %vm1451, %v1439
        %1457 = vst.msk [vmem:[%s218 + $0x28] sm:$0xff] %vm1451, %v1440
        %1458 = vst.msk [vmem:[%s218 + $0x30] sm:$0xff] %vm1451, %v1441
        %1459 = vst.msk [vmem:[%s218 + $0x38] sm:$0xff] %vm1451, %v1442
        %1460 = vst.msk [vmem:[%s218 + $0x40] sm:$0xff] %vm1451, %v1443
        %1461 = vst.msk [vmem:[%s218 + $0x48] sm:$0xff] %vm1451, %v1444
        %1462 = vst.msk [vmem:[%s218 + $0x50] sm:$0xff] %vm1451, %v1445
        %1463 = vst.msk [vmem:[%s218 + $0x58] sm:$0xff] %vm1451, %v1446
        %1464 = vst.msk [vmem:[%s218 + $0x60] sm:$0xff] %vm1451, %v1447
        %1465 = vst.msk [vmem:[%s218 + $0x68] sm:$0xff] %vm1451, %v1448
        %1466 = vst.msk [vmem:[%s218 + $0x70] sm:$0xff] %vm1451, %v1449
        %1467 = vst.msk [vmem:[%s218 + $0x78] sm:$0xff] %vm1451, %v1450
        %s1468 = sand.u32 %s137, 1
        %s1469 = scalar_lea.sflag [#allocation3], %s1468
        %s1470 = sand.u32 %s137, 1
        %s1471 = smul.addr %s1470, 128
        %s1472 = scalar_lea.vmem [#allocation2], %s1471
        // Predicated region
        $region41: #{tpu_custom_call.1} parent=39 // pred_check
          %p1473 = pneg %p147
        $region42: #{tpu_custom_call.1} parent=39 // pred_check_branch
          %1475 = sbr.rel (%p1473) target = $region44
        $region43: #{tpu_custom_call.1} parent=39 // pred_region
          %s1476 = smul.u32 16, %s19
          %s1478 = ssub.s32 2048, 2048
          %1479 = vsyncadd %s1469, %s1478
          %s1480 = smul.addr %s1476, 128
          %s1481 = scalar_lea.hbm %s5, %s1480
          %s1482 = sshll.u32 %s1472, 4
          %s1483 = int_to_ptr.vmem [resolvable:$true] %s1482
          %1488 = dma.vmem_to_hbm [thread:$0]  %s1483, 2048, %s1481, %s1469, 128, 128, 8
        $region44: #{tpu_custom_call.1} parent=39 // pred_fallthru
          _
      $region40: #{tpu_custom_call.1} parent=5 // pred_fallthru
        _
      %p1489 = scmp.le.s32.totalorder 2, %s14
      // Predicated region
      $region45: #{tpu_custom_call.1} parent=5 // pred_check
        %p1490 = pneg %p1489
      $region46: #{tpu_custom_call.1} parent=5 // pred_check_branch
        %1492 = sbr.rel (%p1490) target = $region48
      $region47: #{tpu_custom_call.1} parent=5 // pred_region
        %s1493 = ssub.s32 %s14, 2
        // Predicated region
        $region49: #{tpu_custom_call.1} parent=47 // pred_check
          %p1494 = pneg %p153
        $region50: #{tpu_custom_call.1} parent=47 // pred_check_branch
          %1496 = sbr.rel (%p1494) target = $region52
        $region51: #{tpu_custom_call.1} parent=47 // pred_region
          %s1497 = sand.u32 %s138, 1
          %s1498 = scalar_lea.sflag [#allocation3], %s1497
          %s1499 = sand.u32 %s138, 1
          %s1500 = smul.addr %s1499, 128
          %s1501 = scalar_lea.vmem [#allocation2], %s1500
          %1502 = dma.done %s1498, 2048
        $region52: #{tpu_custom_call.1} parent=47 // pred_fallthru
          _
      $region48: #{tpu_custom_call.1} parent=5 // pred_fallthru
        _
    $region6: #{tpu_custom_call.1} parent=1 // loop_footer
      %s18 = sadd.s32 1, %s14
    $region7: #{tpu_custom_call.1} parent=1 // loop_footer_branch
      %13 = sbr.rel target = $region3
    $region8: #{tpu_custom_call.1} parent=1 // loop_exit
      _
    %1503 = vsyncpa [#allocation3], 1
    %s1504 = scalar_lea.sflag [#allocation3], 1
    %1505 = vsyncpa %s1504, 1

</llo_original>
